<compile_context>
chip_gen: v7x
topology: tpu7x:2x2x1
jax: 0.10.0
libtpu: 0.0.40
codegen_flags: <defaults>
</compile_context>

<pallas_src>
import jax
import jax.numpy as jnp
from jax.experimental import pallas as pl
from jax.experimental.pallas import tpu as pltpu


def decoder_lstm_kernel(
    lens_ref,   # (bc, 1)        int32  valid lengths (0 for padded batch rows)
    gx_ref,     # (T, bc, 4H)    f32    precomputed x@W_ih + b, time-major
    h0_ref,     # (bc, H)        f32    initial hidden
    c0_ref,     # (bc, H)        f32    initial cell
    whh_ref,    # (H, 4H)        f32    hidden->gates weight (transposed)
    wout_ref,   # (H, Spad)      f32    output projection (zero-padded lanes)
    bout_ref,   # (1, Spad)      f32    output bias (-1e30 on pad lanes)
    logp_ref,   # (T, bc, Spad)  f32    log-softmax output
    hn_ref,     # (bc, H)        f32    final hidden
    cn_ref,     # (bc, H)        f32    final cell
):
    bc, H = h0_ref.shape
    T = gx_ref.shape[0]

    # Hoisted loads: time-invariant operands stay resident across the loop.
    lens = lens_ref[...]                       # (bc, 1) int32
    whh = whh_ref[...]                         # (H, 4H)
    wout = wout_ref[...]                       # (H, Spad)
    bout = bout_ref[...]                       # (1, Spad)

    # Lane mask selecting the 'g' (cell candidate) block of the gates vreg.
    lane = jax.lax.broadcasted_iota(jnp.int32, (bc, 4 * H), 1)
    g_mask = (lane >= 2 * H) & (lane < 3 * H)
    zero_h = jnp.zeros((bc, H), jnp.float32)

    def step(t, carry):
        h_prev, c_prev = carry

        # Only the hidden->gates matmul is on the serial critical path.
        gates = gx_ref[t] + jnp.dot(h_prev, whh,
                                    preferred_element_type=jnp.float32)

        # Whole-vreg activations (2 EUP passes + 1 select), then static
        # slices feed the VPU combine.  (At real scale pick H % 128 == 0 so
        # these slices are vreg-aligned.)
        act = jnp.where(g_mask, jnp.tanh(gates), jax.nn.sigmoid(gates))
        i_g = act[:, 0 * H:1 * H]
        f_g = act[:, 1 * H:2 * H]
        g_g = act[:, 2 * H:3 * H]
        o_g = act[:, 3 * H:4 * H]

        c_new = f_g * c_prev + i_g * g_g
        h_new = o_g * jnp.tanh(c_new)

        # Packed-sequence mask: freeze state for t >= length[b].
        valid = t < lens                                   # (bc, 1) bool
        h_next = jnp.where(valid, h_new, h_prev)
        c_next = jnp.where(valid, c_new, c_prev)

        # Fused output Linear + LogSoftmax: independent of the recurrence's
        # forward dependence, so it overlaps with the next step's matmul.
        # pad_packed_sequence zero-fills padded output positions first.
        h_out = jnp.where(valid, h_new, zero_h)
        y = jnp.dot(h_out, wout, preferred_element_type=jnp.float32) + bout
        m = jnp.max(y, axis=-1, keepdims=True)             # pad lanes = -1e30
        lse = m + jnp.log(jnp.sum(jnp.exp(y - m), axis=-1, keepdims=True))
        logp_ref[t] = y - lse                              # lane-dense store

        return h_next, c_next

    h_fin, c_fin = jax.lax.fori_loop(
        0, T, step, (h0_ref[...], c0_ref[...]), unroll=min(T, 8)
    )
    hn_ref[...] = h_fin
    cn_ref[...] = c_fin


def _round_up(x, m):
    return (x + m - 1) // m * m


@jax.jit
def decoder_lstm_forward(input_ids, lengths, h0, c0, params):
    """input_ids: (B, T) int32; lengths: (B,) int32; h0/c0: (1, B, H)."""
    emb_table = params["embedding"]          # (V, E), padding row zeroed
    w_ih = params["w_ih"]                    # (E, 4H)
    w_hh = params["w_hh"]                    # (H, 4H)
    b = params["b"]                          # (1, 4H)
    w_out = params["w_out"]                  # (H, S)
    b_out = params["b_out"]                  # (1, S)

    B, T = input_ids.shape
    H = h0.shape[-1]
    S = w_out.shape[1]
    Spad = _round_up(S, 128)                 # lane-dense logp output

    # Batch chunking: one chunk for small batches; 128-row chunks (MXU-row
    # filling) sharded across TensorCores on v7x for large batches.
    bc = min(_round_up(B, 8), 128)
    Bp = _round_up(B, bc)
    grid = (Bp // bc,)

    # TODO(synk): dropout is identity (inference mode).
    # Fold embedding lookup + input projection + bias into one (V, 4H) table;
    # the gather replaces the (B,T,E) embedding round trip and the in-kernel
    # input-projection matmul.
    gate_table = jnp.dot(emb_table, w_ih,
                         preferred_element_type=jnp.float32) + b   # (V, 4H)
    ids_tm = jnp.transpose(input_ids, (1, 0))                      # (T, B)
    ids_tm = jnp.pad(ids_tm, ((0, 0), (0, Bp - B)))                # pad batch
    gx = jnp.take(gate_table, ids_tm, axis=0)                      # (T, Bp, 4H)

    lens_p = jnp.pad(lengths.astype(jnp.int32), (0, Bp - B)).reshape(Bp, 1)
    h0_p = jnp.pad(h0[0], ((0, Bp - B), (0, 0)))                   # (Bp, H)
    c0_p = jnp.pad(c0[0], ((0, Bp - B), (0, 0)))                   # (Bp, H)

    # Lane padding of the output head; pad logits = -1e30 so the pad lanes
    # contribute exactly 0 to the log-softmax normalizer.
    w_out_p = jnp.pad(w_out, ((0, 0), (0, Spad - S)))
    b_out_p = jnp.pad(b_out, ((0, 0), (0, Spad - S)), constant_values=-1e30)

    # Explicit VMEM budget (per-chunk blocks, generous double-buffer margin).
    block_bytes = 4 * (T * bc * 4 * H + T * bc * Spad + 3 * bc * H + bc
                       + H * 4 * H + H * Spad + Spad)
    vmem_limit = int(min(48 * 1024 * 1024,
                         max(8 * 1024 * 1024, 6 * block_bytes)))
    # TODO(synk): at large T, time-chunk gx/logp (emit_pipeline) instead of
    # keeping full (T, bc, *) blocks resident — first thing to OOM on v7x.

    logp_t, h_n, c_n = pl.pallas_call(
        decoder_lstm_kernel,
        out_shape=(
            jax.ShapeDtypeStruct((T, Bp, Spad), jnp.float32),
            jax.ShapeDtypeStruct((Bp, H), jnp.float32),
            jax.ShapeDtypeStruct((Bp, H), jnp.float32),
        ),
        grid_spec=pltpu.PrefetchScalarGridSpec(
            num_scalar_prefetch=0,
            grid=grid,
            in_specs=[
                pl.BlockSpec((bc, 1), lambda j: (j, 0)),             # lens
                pl.BlockSpec((T, bc, 4 * H), lambda j: (0, j, 0)),   # gx
                pl.BlockSpec((bc, H), lambda j: (j, 0)),             # h0
                pl.BlockSpec((bc, H), lambda j: (j, 0)),             # c0
                pl.BlockSpec((H, 4 * H), lambda j: (0, 0)),          # w_hh
                pl.BlockSpec((H, Spad), lambda j: (0, 0)),           # w_out
                pl.BlockSpec((1, Spad), lambda j: (0, 0)),           # b_out
            ],
            out_specs=[
                pl.BlockSpec((T, bc, Spad), lambda j: (0, j, 0)),    # logp
                pl.BlockSpec((bc, H), lambda j: (j, 0)),             # h_n
                pl.BlockSpec((bc, H), lambda j: (j, 0)),             # c_n
            ],
        ),
        compiler_params=pltpu.CompilerParams(
            dimension_semantics=("parallel",),
            vmem_limit_bytes=vmem_limit,
        ),
    )(lens_p, gx, h0_p, c0_p, w_hh, w_out_p, b_out_p)

    # Strip batch/lane padding; return batch_first (B, T, S) and (1, B, H).
    logp = jnp.transpose(logp_t[:, :B, :S], (1, 0, 2))
    return logp, (h_n[:B][None], c_n[:B][None])


def reference_forward(input_ids, lengths, h0, c0, params):
    """Pure-JAX reference matching the PyTorch module (eval mode)."""
    emb, w_ih, w_hh = params["embedding"], params["w_ih"], params["w_hh"]
    b, w_out, b_out = params["b"], params["w_out"], params["b_out"]
    B, T = input_ids.shape
    H = h0.shape[-1]
    x = jnp.take(emb, input_ids, axis=0)                    # (B, T, E)
    h, c = h0[0], c0[0]
    outs = []
    for t in range(T):
        gates = x[:, t, :] @ w_ih + b + h @ w_hh
        i = jax.nn.sigmoid(gates[:, 0 * H:1 * H])
        f = jax.nn.sigmoid(gates[:, 1 * H:2 * H])
        g = jnp.tanh(gates[:, 2 * H:3 * H])
        o = jax.nn.sigmoid(gates[:, 3 * H:4 * H])
        c_new = f * c + i * g
        h_new = o * jnp.tanh(c_new)
        valid = (t < lengths)[:, None]
        h = jnp.where(valid, h_new, h)
        c = jnp.where(valid, c_new, c)
        outs.append(jnp.where(valid, h_new, 0.0))
    hs = jnp.stack(outs, axis=1)                            # (B, T, H)
    logp = jax.nn.log_softmax(hs @ w_out + b_out, axis=-1)
    return logp, (h[None], c[None])


def init_params(key, number_of_words, number_of_slots, embeddings_size,
                hidden_size, padding_idx):
    k_emb, k_ih, k_hh, k_bih, k_bhh, k_wo, k_bo = jax.random.split(key, 7)
    V, E, H, S = number_of_words, embeddings_size, hidden_size, number_of_slots

    emb = jax.random.normal(k_emb, (V, E), jnp.float32)
    emb = emb.at[padding_idx].set(0.0)             # padding_idx row is zero

    bound = 1.0 / jnp.sqrt(H)
    w_ih = jax.random.uniform(k_ih, (4 * H, E), jnp.float32, -bound, bound)
    w_hh = jax.random.uniform(k_hh, (4 * H, H), jnp.float32, -bound, bound)
    b_ih = jax.random.uniform(k_bih, (4 * H,), jnp.float32, -bound, bound)
    b_hh = jax.random.uniform(k_bhh, (4 * H,), jnp.float32, -bound, bound)

    w_out = jax.random.uniform(k_wo, (S, H), jnp.float32, -bound, bound)
    b_out = jax.random.uniform(k_bo, (S,), jnp.float32, -bound, bound)

    return {
        "embedding": emb,
        "w_ih": w_ih.T,                            # (E, 4H)
        "w_hh": w_hh.T,                            # (H, 4H)
        "b": (b_ih + b_hh).reshape(1, 4 * H),
        "w_out": w_out.T,                          # (H, S)
        "b_out": b_out.reshape(1, S),
    }


if __name__ == "__main__":
    number_of_words = 50
    number_of_slots = 16
    embeddings_size = 32
    hidden_size = 32
    padding_idx = 0
    B, T = 4, 8

    key = jax.random.PRNGKey(0)
    k_params, k_ids = jax.random.split(key)
    params = init_params(k_params, number_of_words, number_of_slots,
                         embeddings_size, hidden_size, padding_idx)

    # Sorted (descending) lengths, enforce_sorted=True style; pad with idx 0.
    lengths = jnp.array([8, 7, 5, 3], dtype=jnp.int32)
    ids = jax.random.randint(k_ids, (B, T), 1, number_of_words, dtype=jnp.int32)
    t_idx = jnp.arange(T)[None, :]
    input_ids = jnp.where(t_idx < lengths[:, None], ids, padding_idx)

    # initHidden equivalent.
    h0 = jnp.zeros((1, B, hidden_size), jnp.float32)
    c0 = jnp.zeros((1, B, hidden_size), jnp.float32)

    logp, (h_n, c_n) = decoder_lstm_forward(input_ids, lengths, h0, c0, params)
    jax.block_until_ready((logp, h_n, c_n))

    assert logp.shape == (B, T, number_of_slots)
    assert h_n.shape == (1, B, hidden_size) and c_n.shape == (1, B, hidden_size)
    assert bool(jnp.all(jnp.isfinite(logp)))
    # log_softmax rows must (approximately) sum to 1 in probability space.
    assert bool(jnp.allclose(jnp.sum(jnp.exp(logp), axis=-1), 1.0, atol=1e-4))

    # Cross-check against a pure-JAX reference of the same forward pass.
    logp_ref, (h_ref, c_ref) = reference_forward(input_ids, lengths, h0, c0,
                                                 params)
    assert bool(jnp.allclose(logp, logp_ref, atol=1e-3, rtol=1e-3))
    assert bool(jnp.allclose(h_n, h_ref, atol=1e-3, rtol=1e-3))
    assert bool(jnp.allclose(c_n, c_ref, atol=1e-3, rtol=1e-3))

    print("KERNEL_OK")
</pallas_src>

<mosaic_0001>
module attributes {stable_mosaic.version = 11 : i64} {
  func.func @decoder_lstm_kernel(%arg0: i32, %arg1: memref<8x1xi32, #tpu.memory_space<vmem>>, %arg2: memref<8x8x128xf32, #tpu.memory_space<vmem>>, %arg3: memref<8x32xf32, #tpu.memory_space<vmem>>, %arg4: memref<8x32xf32, #tpu.memory_space<vmem>>, %arg5: memref<32x128xf32, #tpu.memory_space<vmem>>, %arg6: memref<32x128xf32, #tpu.memory_space<vmem>>, %arg7: memref<1x128xf32, #tpu.memory_space<vmem>>, %arg8: memref<8x8x128xf32, #tpu.memory_space<vmem>>, %arg9: memref<8x32xf32, #tpu.memory_space<vmem>>, %arg10: memref<8x32xf32, #tpu.memory_space<vmem>>) attributes {dimension_semantics = [#tpu.dimension_semantics<parallel>], iteration_bounds = array<i64: 1>, scalar_prefetch = 0 : i64, scratch_operands = 0 : i64, tpu.core_type = #tpu.core_type<tc>, window_params = [{transform_indices = @transform_0, window_bounds = array<i64: 8, 1>}, {transform_indices = @transform_1, window_bounds = array<i64: 8, 8, 128>}, {transform_indices = @transform_2, window_bounds = array<i64: 8, 32>}, {transform_indices = @transform_3, window_bounds = array<i64: 8, 32>}, {pipeline_mode = #tpu.pipeline_mode<synchronous>, transform_indices = @transform_4, window_bounds = array<i64: 32, 128>}, {pipeline_mode = #tpu.pipeline_mode<synchronous>, transform_indices = @transform_5, window_bounds = array<i64: 32, 128>}, {pipeline_mode = #tpu.pipeline_mode<synchronous>, transform_indices = @transform_6, window_bounds = array<i64: 1, 128>}, {transform_indices = @transform_7, window_bounds = array<i64: 8, 8, 128>}, {transform_indices = @transform_8, window_bounds = array<i64: 8, 32>}, {transform_indices = @transform_9, window_bounds = array<i64: 8, 32>}]} {
    %c0 = arith.constant 0 : index
    %c0_0 = arith.constant 0 : index
    %0 = vector.load %arg1[%c0, %c0_0] : memref<8x1xi32, #tpu.memory_space<vmem>>, vector<8x1xi32>
    %c0_1 = arith.constant 0 : index
    %c0_2 = arith.constant 0 : index
    %1 = vector.load %arg5[%c0_1, %c0_2] : memref<32x128xf32, #tpu.memory_space<vmem>>, vector<32x128xf32>
    %c0_3 = arith.constant 0 : index
    %c0_4 = arith.constant 0 : index
    %2 = vector.load %arg6[%c0_3, %c0_4] : memref<32x128xf32, #tpu.memory_space<vmem>>, vector<32x128xf32>
    %c0_5 = arith.constant 0 : index
    %c0_6 = arith.constant 0 : index
    %3 = vector.load %arg7[%c0_5, %c0_6] : memref<1x128xf32, #tpu.memory_space<vmem>>, vector<1x128xf32>
    %4 = tpu.iota {dimensions = array<i32: 1>} : vector<8x128xi32>
    %c64_i32 = arith.constant 64 : i32
    %5 = vector.broadcast %c64_i32 : i32 to vector<8x128xi32>
    %6 = arith.cmpi sge, %4, %5 : vector<8x128xi32>
    %c96_i32 = arith.constant 96 : i32
    %7 = vector.broadcast %c96_i32 : i32 to vector<8x128xi32>
    %8 = arith.cmpi slt, %4, %7 : vector<8x128xi32>
    %9 = arith.andi %6, %8 : vector<8x128xi1>
    %cst = arith.constant 0.000000e+00 : f32
    %10 = vector.broadcast %cst : f32 to vector<8x32xf32>
    %c0_7 = arith.constant 0 : index
    %c0_8 = arith.constant 0 : index
    %11 = vector.load %arg3[%c0_7, %c0_8] : memref<8x32xf32, #tpu.memory_space<vmem>>, vector<8x32xf32>
    %c0_9 = arith.constant 0 : index
    %c0_10 = arith.constant 0 : index
    %12 = vector.load %arg4[%c0_9, %c0_10] : memref<8x32xf32, #tpu.memory_space<vmem>>, vector<8x32xf32>
    %c0_i32 = arith.constant 0 : i32
    %13 = arith.index_cast %c0_i32 : i32 to index
    %c0_11 = arith.constant 0 : index
    %c0_12 = arith.constant 0 : index
    %14 = vector.load %arg2[%13, %c0_11, %c0_12] : memref<8x8x128xf32, #tpu.memory_space<vmem>>, vector<1x8x128xf32>
    %15 = vector.shape_cast %14 : vector<1x8x128xf32> to vector<8x128xf32>
    %cst_13 = arith.constant dense<0.000000e+00> : vector<8x128xf32>
    %16 = tpu.matmul %11, %1, %cst_13 {dimension_numbers = #tpu.dot_dimension_numbers<[1], [0], [0], [1], [0, 0, 1, 1], [], []>} : vector<8x32xf32>, vector<32x128xf32>, vector<8x128xf32> -> vector<8x128xf32>
    %17 = arith.addf %15, %16 : vector<8x128xf32>
    %18 = math.tanh %17 : vector<8x128xf32>
    %19 = arith.negf %17 : vector<8x128xf32>
    %20 = math.exp %19 : vector<8x128xf32>
    %cst_14 = arith.constant 1.000000e+00 : f32
    %21 = vector.broadcast %cst_14 : f32 to vector<8x128xf32>
    %22 = arith.addf %21, %20 : vector<8x128xf32>
    %23 = arith.divf %21, %22 : vector<8x128xf32>
    %24 = arith.select %9, %18, %23 : vector<8x128xi1>, vector<8x128xf32>
    %25 = vector.extract_strided_slice %24 {offsets = [0, 0], sizes = [8, 32], strides = [1, 1]} : vector<8x128xf32> to vector<8x32xf32>
    %26 = vector.extract_strided_slice %24 {offsets = [0, 32], sizes = [8, 32], strides = [1, 1]} : vector<8x128xf32> to vector<8x32xf32>
    %27 = vector.extract_strided_slice %24 {offsets = [0, 64], sizes = [8, 32], strides = [1, 1]} : vector<8x128xf32> to vector<8x32xf32>
    %28 = vector.extract_strided_slice %24 {offsets = [0, 96], sizes = [8, 32], strides = [1, 1]} : vector<8x128xf32> to vector<8x32xf32>
    %29 = arith.mulf %26, %12 : vector<8x32xf32>
    %30 = arith.mulf %25, %27 : vector<8x32xf32>
    %31 = arith.addf %29, %30 : vector<8x32xf32>
    %32 = math.tanh %31 : vector<8x32xf32>
    %33 = arith.mulf %28, %32 : vector<8x32xf32>
    %34 = vector.broadcast %c0_i32 : i32 to vector<8x1xi32>
    %35 = arith.cmpi slt, %34, %0 : vector<8x1xi32>
    %36 = vector.shape_cast %35 : vector<8x1xi1> to vector<8x1xi1>
    %37 = vector.broadcast %36 : vector<8x1xi1> to vector<8x32xi1>
    %38 = arith.select %37, %33, %11 : vector<8x32xi1>, vector<8x32xf32>
    %39 = vector.shape_cast %35 : vector<8x1xi1> to vector<8x1xi1>
    %40 = vector.broadcast %39 : vector<8x1xi1> to vector<8x32xi1>
    %41 = arith.select %40, %31, %12 : vector<8x32xi1>, vector<8x32xf32>
    %42 = vector.shape_cast %35 : vector<8x1xi1> to vector<8x1xi1>
    %43 = vector.broadcast %42 : vector<8x1xi1> to vector<8x32xi1>
    %44 = arith.select %43, %33, %10 : vector<8x32xi1>, vector<8x32xf32>
    %cst_15 = arith.constant dense<0.000000e+00> : vector<8x128xf32>
    %45 = tpu.matmul %44, %2, %cst_15 {dimension_numbers = #tpu.dot_dimension_numbers<[1], [0], [0], [1], [0, 0, 1, 1], [], []>} : vector<8x32xf32>, vector<32x128xf32>, vector<8x128xf32> -> vector<8x128xf32>
    %46 = vector.broadcast %3 : vector<1x128xf32> to vector<8x128xf32>
    %47 = arith.addf %45, %46 : vector<8x128xf32>
    %cst_16 = arith.constant dense<0xFF800000> : vector<8xf32>
    %48 = vector.multi_reduction <maximumf>, %47, %cst_16 [1] : vector<8x128xf32> to vector<8xf32>
    %49 = vector.shape_cast %48 : vector<8xf32> to vector<8x1xf32>
    %50 = vector.broadcast %49 : vector<8x1xf32> to vector<8x128xf32>
    %51 = arith.subf %47, %50 : vector<8x128xf32>
    %52 = math.exp %51 : vector<8x128xf32>
    %cst_17 = arith.constant dense<0.000000e+00> : vector<8xf32>
    %53 = vector.multi_reduction <add>, %52, %cst_17 [1] : vector<8x128xf32> to vector<8xf32>
    %54 = vector.shape_cast %53 : vector<8xf32> to vector<8x1xf32>
    %55 = math.log %54 : vector<8x1xf32>
    %56 = arith.addf %49, %55 : vector<8x1xf32>
    %57 = vector.broadcast %56 : vector<8x1xf32> to vector<8x128xf32>
    %58 = arith.subf %47, %57 : vector<8x128xf32>
    %59 = arith.index_cast %c0_i32 : i32 to index
    %c0_18 = arith.constant 0 : index
    %c0_19 = arith.constant 0 : index
    %60 = vector.load %arg8[%59, %c0_18, %c0_19] : memref<8x8x128xf32, #tpu.memory_space<vmem>>, vector<1x8x128xf32>
    %61 = vector.shape_cast %60 : vector<1x8x128xf32> to vector<8x128xf32>
    %62 = vector.shape_cast %58 : vector<8x128xf32> to vector<1x8x128xf32>
    tpu.vector_store %arg8[%59, %c0_18, %c0_19], %62 {strides = array<i32>} : memref<8x8x128xf32, #tpu.memory_space<vmem>>, vector<1x8x128xf32>,
    %c1_i32 = arith.constant 1 : i32
    %63 = arith.index_cast %c1_i32 : i32 to index
    %c0_20 = arith.constant 0 : index
    %c0_21 = arith.constant 0 : index
    %64 = vector.load %arg2[%63, %c0_20, %c0_21] : memref<8x8x128xf32, #tpu.memory_space<vmem>>, vector<1x8x128xf32>
    %65 = vector.shape_cast %64 : vector<1x8x128xf32> to vector<8x128xf32>
    %cst_22 = arith.constant dense<0.000000e+00> : vector<8x128xf32>
    %66 = tpu.matmul %38, %1, %cst_22 {dimension_numbers = #tpu.dot_dimension_numbers<[1], [0], [0], [1], [0, 0, 1, 1], [], []>} : vector<8x32xf32>, vector<32x128xf32>, vector<8x128xf32> -> vector<8x128xf32>
    %67 = arith.addf %65, %66 : vector<8x128xf32>
    %68 = math.tanh %67 : vector<8x128xf32>
    %69 = arith.negf %67 : vector<8x128xf32>
    %70 = math.exp %69 : vector<8x128xf32>
    %cst_23 = arith.constant 1.000000e+00 : f32
    %71 = vector.broadcast %cst_23 : f32 to vector<8x128xf32>
    %72 = arith.addf %71, %70 : vector<8x128xf32>
    %73 = arith.divf %71, %72 : vector<8x128xf32>
    %74 = arith.select %9, %68, %73 : vector<8x128xi1>, vector<8x128xf32>
    %75 = vector.extract_strided_slice %74 {offsets = [0, 0], sizes = [8, 32], strides = [1, 1]} : vector<8x128xf32> to vector<8x32xf32>
    %76 = vector.extract_strided_slice %74 {offsets = [0, 32], sizes = [8, 32], strides = [1, 1]} : vector<8x128xf32> to vector<8x32xf32>
    %77 = vector.extract_strided_slice %74 {offsets = [0, 64], sizes = [8, 32], strides = [1, 1]} : vector<8x128xf32> to vector<8x32xf32>
    %78 = vector.extract_strided_slice %74 {offsets = [0, 96], sizes = [8, 32], strides = [1, 1]} : vector<8x128xf32> to vector<8x32xf32>
    %79 = arith.mulf %76, %41 : vector<8x32xf32>
    %80 = arith.mulf %75, %77 : vector<8x32xf32>
    %81 = arith.addf %79, %80 : vector<8x32xf32>
    %82 = math.tanh %81 : vector<8x32xf32>
    %83 = arith.mulf %78, %82 : vector<8x32xf32>
    %84 = vector.broadcast %c1_i32 : i32 to vector<8x1xi32>
    %85 = arith.cmpi slt, %84, %0 : vector<8x1xi32>
    %86 = vector.shape_cast %85 : vector<8x1xi1> to vector<8x1xi1>
    %87 = vector.broadcast %86 : vector<8x1xi1> to vector<8x32xi1>
    %88 = arith.select %87, %83, %38 : vector<8x32xi1>, vector<8x32xf32>
    %89 = vector.shape_cast %85 : vector<8x1xi1> to vector<8x1xi1>
    %90 = vector.broadcast %89 : vector<8x1xi1> to vector<8x32xi1>
    %91 = arith.select %90, %81, %41 : vector<8x32xi1>, vector<8x32xf32>
    %92 = vector.shape_cast %85 : vector<8x1xi1> to vector<8x1xi1>
    %93 = vector.broadcast %92 : vector<8x1xi1> to vector<8x32xi1>
    %94 = arith.select %93, %83, %10 : vector<8x32xi1>, vector<8x32xf32>
    %cst_24 = arith.constant dense<0.000000e+00> : vector<8x128xf32>
    %95 = tpu.matmul %94, %2, %cst_24 {dimension_numbers = #tpu.dot_dimension_numbers<[1], [0], [0], [1], [0, 0, 1, 1], [], []>} : vector<8x32xf32>, vector<32x128xf32>, vector<8x128xf32> -> vector<8x128xf32>
    %96 = vector.broadcast %3 : vector<1x128xf32> to vector<8x128xf32>
    %97 = arith.addf %95, %96 : vector<8x128xf32>
    %cst_25 = arith.constant dense<0xFF800000> : vector<8xf32>
    %98 = vector.multi_reduction <maximumf>, %97, %cst_25 [1] : vector<8x128xf32> to vector<8xf32>
    %99 = vector.shape_cast %98 : vector<8xf32> to vector<8x1xf32>
    %100 = vector.broadcast %99 : vector<8x1xf32> to vector<8x128xf32>
    %101 = arith.subf %97, %100 : vector<8x128xf32>
    %102 = math.exp %101 : vector<8x128xf32>
    %cst_26 = arith.constant dense<0.000000e+00> : vector<8xf32>
    %103 = vector.multi_reduction <add>, %102, %cst_26 [1] : vector<8x128xf32> to vector<8xf32>
    %104 = vector.shape_cast %103 : vector<8xf32> to vector<8x1xf32>
    %105 = math.log %104 : vector<8x1xf32>
    %106 = arith.addf %99, %105 : vector<8x1xf32>
    %107 = vector.broadcast %106 : vector<8x1xf32> to vector<8x128xf32>
    %108 = arith.subf %97, %107 : vector<8x128xf32>
    %109 = arith.index_cast %c1_i32 : i32 to index
    %c0_27 = arith.constant 0 : index
    %c0_28 = arith.constant 0 : index
    %110 = vector.load %arg8[%109, %c0_27, %c0_28] : memref<8x8x128xf32, #tpu.memory_space<vmem>>, vector<1x8x128xf32>
    %111 = vector.shape_cast %110 : vector<1x8x128xf32> to vector<8x128xf32>
    %112 = vector.shape_cast %108 : vector<8x128xf32> to vector<1x8x128xf32>
    tpu.vector_store %arg8[%109, %c0_27, %c0_28], %112 {strides = array<i32>} : memref<8x8x128xf32, #tpu.memory_space<vmem>>, vector<1x8x128xf32>,
    %c2_i32 = arith.constant 2 : i32
    %113 = arith.index_cast %c2_i32 : i32 to index
    %c0_29 = arith.constant 0 : index
    %c0_30 = arith.constant 0 : index
    %114 = vector.load %arg2[%113, %c0_29, %c0_30] : memref<8x8x128xf32, #tpu.memory_space<vmem>>, vector<1x8x128xf32>
    %115 = vector.shape_cast %114 : vector<1x8x128xf32> to vector<8x128xf32>
    %cst_31 = arith.constant dense<0.000000e+00> : vector<8x128xf32>
    %116 = tpu.matmul %88, %1, %cst_31 {dimension_numbers = #tpu.dot_dimension_numbers<[1], [0], [0], [1], [0, 0, 1, 1], [], []>} : vector<8x32xf32>, vector<32x128xf32>, vector<8x128xf32> -> vector<8x128xf32>
    %117 = arith.addf %115, %116 : vector<8x128xf32>
    %118 = math.tanh %117 : vector<8x128xf32>
    %119 = arith.negf %117 : vector<8x128xf32>
    %120 = math.exp %119 : vector<8x128xf32>
    %cst_32 = arith.constant 1.000000e+00 : f32
    %121 = vector.broadcast %cst_32 : f32 to vector<8x128xf32>
    %122 = arith.addf %121, %120 : vector<8x128xf32>
    %123 = arith.divf %121, %122 : vector<8x128xf32>
    %124 = arith.select %9, %118, %123 : vector<8x128xi1>, vector<8x128xf32>
    %125 = vector.extract_strided_slice %124 {offsets = [0, 0], sizes = [8, 32], strides = [1, 1]} : vector<8x128xf32> to vector<8x32xf32>
    %126 = vector.extract_strided_slice %124 {offsets = [0, 32], sizes = [8, 32], strides = [1, 1]} : vector<8x128xf32> to vector<8x32xf32>
    %127 = vector.extract_strided_slice %124 {offsets = [0, 64], sizes = [8, 32], strides = [1, 1]} : vector<8x128xf32> to vector<8x32xf32>
    %128 = vector.extract_strided_slice %124 {offsets = [0, 96], sizes = [8, 32], strides = [1, 1]} : vector<8x128xf32> to vector<8x32xf32>
    %129 = arith.mulf %126, %91 : vector<8x32xf32>
    %130 = arith.mulf %125, %127 : vector<8x32xf32>
    %131 = arith.addf %129, %130 : vector<8x32xf32>
    %132 = math.tanh %131 : vector<8x32xf32>
    %133 = arith.mulf %128, %132 : vector<8x32xf32>
    %134 = vector.broadcast %c2_i32 : i32 to vector<8x1xi32>
    %135 = arith.cmpi slt, %134, %0 : vector<8x1xi32>
    %136 = vector.shape_cast %135 : vector<8x1xi1> to vector<8x1xi1>
    %137 = vector.broadcast %136 : vector<8x1xi1> to vector<8x32xi1>
    %138 = arith.select %137, %133, %88 : vector<8x32xi1>, vector<8x32xf32>
    %139 = vector.shape_cast %135 : vector<8x1xi1> to vector<8x1xi1>
    %140 = vector.broadcast %139 : vector<8x1xi1> to vector<8x32xi1>
    %141 = arith.select %140, %131, %91 : vector<8x32xi1>, vector<8x32xf32>
    %142 = vector.shape_cast %135 : vector<8x1xi1> to vector<8x1xi1>
    %143 = vector.broadcast %142 : vector<8x1xi1> to vector<8x32xi1>
    %144 = arith.select %143, %133, %10 : vector<8x32xi1>, vector<8x32xf32>
    %cst_33 = arith.constant dense<0.000000e+00> : vector<8x128xf32>
    %145 = tpu.matmul %144, %2, %cst_33 {dimension_numbers = #tpu.dot_dimension_numbers<[1], [0], [0], [1], [0, 0, 1, 1], [], []>} : vector<8x32xf32>, vector<32x128xf32>, vector<8x128xf32> -> vector<8x128xf32>
    %146 = vector.broadcast %3 : vector<1x128xf32> to vector<8x128xf32>
    %147 = arith.addf %145, %146 : vector<8x128xf32>
    %cst_34 = arith.constant dense<0xFF800000> : vector<8xf32>
    %148 = vector.multi_reduction <maximumf>, %147, %cst_34 [1] : vector<8x128xf32> to vector<8xf32>
    %149 = vector.shape_cast %148 : vector<8xf32> to vector<8x1xf32>
    %150 = vector.broadcast %149 : vector<8x1xf32> to vector<8x128xf32>
    %151 = arith.subf %147, %150 : vector<8x128xf32>
    %152 = math.exp %151 : vector<8x128xf32>
    %cst_35 = arith.constant dense<0.000000e+00> : vector<8xf32>
    %153 = vector.multi_reduction <add>, %152, %cst_35 [1] : vector<8x128xf32> to vector<8xf32>
    %154 = vector.shape_cast %153 : vector<8xf32> to vector<8x1xf32>
    %155 = math.log %154 : vector<8x1xf32>
    %156 = arith.addf %149, %155 : vector<8x1xf32>
    %157 = vector.broadcast %156 : vector<8x1xf32> to vector<8x128xf32>
    %158 = arith.subf %147, %157 : vector<8x128xf32>
    %159 = arith.index_cast %c2_i32 : i32 to index
    %c0_36 = arith.constant 0 : index
    %c0_37 = arith.constant 0 : index
    %160 = vector.load %arg8[%159, %c0_36, %c0_37] : memref<8x8x128xf32, #tpu.memory_space<vmem>>, vector<1x8x128xf32>
    %161 = vector.shape_cast %160 : vector<1x8x128xf32> to vector<8x128xf32>
    %162 = vector.shape_cast %158 : vector<8x128xf32> to vector<1x8x128xf32>
    tpu.vector_store %arg8[%159, %c0_36, %c0_37], %162 {strides = array<i32>} : memref<8x8x128xf32, #tpu.memory_space<vmem>>, vector<1x8x128xf32>,
    %c3_i32 = arith.constant 3 : i32
    %163 = arith.index_cast %c3_i32 : i32 to index
    %c0_38 = arith.constant 0 : index
    %c0_39 = arith.constant 0 : index
    %164 = vector.load %arg2[%163, %c0_38, %c0_39] : memref<8x8x128xf32, #tpu.memory_space<vmem>>, vector<1x8x128xf32>
    %165 = vector.shape_cast %164 : vector<1x8x128xf32> to vector<8x128xf32>
    %cst_40 = arith.constant dense<0.000000e+00> : vector<8x128xf32>
    %166 = tpu.matmul %138, %1, %cst_40 {dimension_numbers = #tpu.dot_dimension_numbers<[1], [0], [0], [1], [0, 0, 1, 1], [], []>} : vector<8x32xf32>, vector<32x128xf32>, vector<8x128xf32> -> vector<8x128xf32>
    %167 = arith.addf %165, %166 : vector<8x128xf32>
    %168 = math.tanh %167 : vector<8x128xf32>
    %169 = arith.negf %167 : vector<8x128xf32>
    %170 = math.exp %169 : vector<8x128xf32>
    %cst_41 = arith.constant 1.000000e+00 : f32
    %171 = vector.broadcast %cst_41 : f32 to vector<8x128xf32>
    %172 = arith.addf %171, %170 : vector<8x128xf32>
    %173 = arith.divf %171, %172 : vector<8x128xf32>
    %174 = arith.select %9, %168, %173 : vector<8x128xi1>, vector<8x128xf32>
    %175 = vector.extract_strided_slice %174 {offsets = [0, 0], sizes = [8, 32], strides = [1, 1]} : vector<8x128xf32> to vector<8x32xf32>
    %176 = vector.extract_strided_slice %174 {offsets = [0, 32], sizes = [8, 32], strides = [1, 1]} : vector<8x128xf32> to vector<8x32xf32>
    %177 = vector.extract_strided_slice %174 {offsets = [0, 64], sizes = [8, 32], strides = [1, 1]} : vector<8x128xf32> to vector<8x32xf32>
    %178 = vector.extract_strided_slice %174 {offsets = [0, 96], sizes = [8, 32], strides = [1, 1]} : vector<8x128xf32> to vector<8x32xf32>
    %179 = arith.mulf %176, %141 : vector<8x32xf32>
    %180 = arith.mulf %175, %177 : vector<8x32xf32>
    %181 = arith.addf %179, %180 : vector<8x32xf32>
    %182 = math.tanh %181 : vector<8x32xf32>
    %183 = arith.mulf %178, %182 : vector<8x32xf32>
    %184 = vector.broadcast %c3_i32 : i32 to vector<8x1xi32>
    %185 = arith.cmpi slt, %184, %0 : vector<8x1xi32>
    %186 = vector.shape_cast %185 : vector<8x1xi1> to vector<8x1xi1>
    %187 = vector.broadcast %186 : vector<8x1xi1> to vector<8x32xi1>
    %188 = arith.select %187, %183, %138 : vector<8x32xi1>, vector<8x32xf32>
    %189 = vector.shape_cast %185 : vector<8x1xi1> to vector<8x1xi1>
    %190 = vector.broadcast %189 : vector<8x1xi1> to vector<8x32xi1>
    %191 = arith.select %190, %181, %141 : vector<8x32xi1>, vector<8x32xf32>
    %192 = vector.shape_cast %185 : vector<8x1xi1> to vector<8x1xi1>
    %193 = vector.broadcast %192 : vector<8x1xi1> to vector<8x32xi1>
    %194 = arith.select %193, %183, %10 : vector<8x32xi1>, vector<8x32xf32>
    %cst_42 = arith.constant dense<0.000000e+00> : vector<8x128xf32>
    %195 = tpu.matmul %194, %2, %cst_42 {dimension_numbers = #tpu.dot_dimension_numbers<[1], [0], [0], [1], [0, 0, 1, 1], [], []>} : vector<8x32xf32>, vector<32x128xf32>, vector<8x128xf32> -> vector<8x128xf32>
    %196 = vector.broadcast %3 : vector<1x128xf32> to vector<8x128xf32>
    %197 = arith.addf %195, %196 : vector<8x128xf32>
    %cst_43 = arith.constant dense<0xFF800000> : vector<8xf32>
    %198 = vector.multi_reduction <maximumf>, %197, %cst_43 [1] : vector<8x128xf32> to vector<8xf32>
    %199 = vector.shape_cast %198 : vector<8xf32> to vector<8x1xf32>
    %200 = vector.broadcast %199 : vector<8x1xf32> to vector<8x128xf32>
    %201 = arith.subf %197, %200 : vector<8x128xf32>
    %202 = math.exp %201 : vector<8x128xf32>
    %cst_44 = arith.constant dense<0.000000e+00> : vector<8xf32>
    %203 = vector.multi_reduction <add>, %202, %cst_44 [1] : vector<8x128xf32> to vector<8xf32>
    %204 = vector.shape_cast %203 : vector<8xf32> to vector<8x1xf32>
    %205 = math.log %204 : vector<8x1xf32>
    %206 = arith.addf %199, %205 : vector<8x1xf32>
    %207 = vector.broadcast %206 : vector<8x1xf32> to vector<8x128xf32>
    %208 = arith.subf %197, %207 : vector<8x128xf32>
    %209 = arith.index_cast %c3_i32 : i32 to index
    %c0_45 = arith.constant 0 : index
    %c0_46 = arith.constant 0 : index
    %210 = vector.load %arg8[%209, %c0_45, %c0_46] : memref<8x8x128xf32, #tpu.memory_space<vmem>>, vector<1x8x128xf32>
    %211 = vector.shape_cast %210 : vector<1x8x128xf32> to vector<8x128xf32>
    %212 = vector.shape_cast %208 : vector<8x128xf32> to vector<1x8x128xf32>
    tpu.vector_store %arg8[%209, %c0_45, %c0_46], %212 {strides = array<i32>} : memref<8x8x128xf32, #tpu.memory_space<vmem>>, vector<1x8x128xf32>,
    %c4_i32 = arith.constant 4 : i32
    %213 = arith.index_cast %c4_i32 : i32 to index
    %c0_47 = arith.constant 0 : index
    %c0_48 = arith.constant 0 : index
    %214 = vector.load %arg2[%213, %c0_47, %c0_48] : memref<8x8x128xf32, #tpu.memory_space<vmem>>, vector<1x8x128xf32>
    %215 = vector.shape_cast %214 : vector<1x8x128xf32> to vector<8x128xf32>
    %cst_49 = arith.constant dense<0.000000e+00> : vector<8x128xf32>
    %216 = tpu.matmul %188, %1, %cst_49 {dimension_numbers = #tpu.dot_dimension_numbers<[1], [0], [0], [1], [0, 0, 1, 1], [], []>} : vector<8x32xf32>, vector<32x128xf32>, vector<8x128xf32> -> vector<8x128xf32>
    %217 = arith.addf %215, %216 : vector<8x128xf32>
    %218 = math.tanh %217 : vector<8x128xf32>
    %219 = arith.negf %217 : vector<8x128xf32>
    %220 = math.exp %219 : vector<8x128xf32>
    %cst_50 = arith.constant 1.000000e+00 : f32
    %221 = vector.broadcast %cst_50 : f32 to vector<8x128xf32>
    %222 = arith.addf %221, %220 : vector<8x128xf32>
    %223 = arith.divf %221, %222 : vector<8x128xf32>
    %224 = arith.select %9, %218, %223 : vector<8x128xi1>, vector<8x128xf32>
    %225 = vector.extract_strided_slice %224 {offsets = [0, 0], sizes = [8, 32], strides = [1, 1]} : vector<8x128xf32> to vector<8x32xf32>
    %226 = vector.extract_strided_slice %224 {offsets = [0, 32], sizes = [8, 32], strides = [1, 1]} : vector<8x128xf32> to vector<8x32xf32>
    %227 = vector.extract_strided_slice %224 {offsets = [0, 64], sizes = [8, 32], strides = [1, 1]} : vector<8x128xf32> to vector<8x32xf32>
    %228 = vector.extract_strided_slice %224 {offsets = [0, 96], sizes = [8, 32], strides = [1, 1]} : vector<8x128xf32> to vector<8x32xf32>
    %229 = arith.mulf %226, %191 : vector<8x32xf32>
    %230 = arith.mulf %225, %227 : vector<8x32xf32>
    %231 = arith.addf %229, %230 : vector<8x32xf32>
    %232 = math.tanh %231 : vector<8x32xf32>
    %233 = arith.mulf %228, %232 : vector<8x32xf32>
    %234 = vector.broadcast %c4_i32 : i32 to vector<8x1xi32>
    %235 = arith.cmpi slt, %234, %0 : vector<8x1xi32>
    %236 = vector.shape_cast %235 : vector<8x1xi1> to vector<8x1xi1>
    %237 = vector.broadcast %236 : vector<8x1xi1> to vector<8x32xi1>
    %238 = arith.select %237, %233, %188 : vector<8x32xi1>, vector<8x32xf32>
    %239 = vector.shape_cast %235 : vector<8x1xi1> to vector<8x1xi1>
    %240 = vector.broadcast %239 : vector<8x1xi1> to vector<8x32xi1>
    %241 = arith.select %240, %231, %191 : vector<8x32xi1>, vector<8x32xf32>
    %242 = vector.shape_cast %235 : vector<8x1xi1> to vector<8x1xi1>
    %243 = vector.broadcast %242 : vector<8x1xi1> to vector<8x32xi1>
    %244 = arith.select %243, %233, %10 : vector<8x32xi1>, vector<8x32xf32>
    %cst_51 = arith.constant dense<0.000000e+00> : vector<8x128xf32>
    %245 = tpu.matmul %244, %2, %cst_51 {dimension_numbers = #tpu.dot_dimension_numbers<[1], [0], [0], [1], [0, 0, 1, 1], [], []>} : vector<8x32xf32>, vector<32x128xf32>, vector<8x128xf32> -> vector<8x128xf32>
    %246 = vector.broadcast %3 : vector<1x128xf32> to vector<8x128xf32>
    %247 = arith.addf %245, %246 : vector<8x128xf32>
    %cst_52 = arith.constant dense<0xFF800000> : vector<8xf32>
    %248 = vector.multi_reduction <maximumf>, %247, %cst_52 [1] : vector<8x128xf32> to vector<8xf32>
    %249 = vector.shape_cast %248 : vector<8xf32> to vector<8x1xf32>
    %250 = vector.broadcast %249 : vector<8x1xf32> to vector<8x128xf32>
    %251 = arith.subf %247, %250 : vector<8x128xf32>
    %252 = math.exp %251 : vector<8x128xf32>
    %cst_53 = arith.constant dense<0.000000e+00> : vector<8xf32>
    %253 = vector.multi_reduction <add>, %252, %cst_53 [1] : vector<8x128xf32> to vector<8xf32>
    %254 = vector.shape_cast %253 : vector<8xf32> to vector<8x1xf32>
    %255 = math.log %254 : vector<8x1xf32>
    %256 = arith.addf %249, %255 : vector<8x1xf32>
    %257 = vector.broadcast %256 : vector<8x1xf32> to vector<8x128xf32>
    %258 = arith.subf %247, %257 : vector<8x128xf32>
    %259 = arith.index_cast %c4_i32 : i32 to index
    %c0_54 = arith.constant 0 : index
    %c0_55 = arith.constant 0 : index
    %260 = vector.load %arg8[%259, %c0_54, %c0_55] : memref<8x8x128xf32, #tpu.memory_space<vmem>>, vector<1x8x128xf32>
    %261 = vector.shape_cast %260 : vector<1x8x128xf32> to vector<8x128xf32>
    %262 = vector.shape_cast %258 : vector<8x128xf32> to vector<1x8x128xf32>
    tpu.vector_store %arg8[%259, %c0_54, %c0_55], %262 {strides = array<i32>} : memref<8x8x128xf32, #tpu.memory_space<vmem>>, vector<1x8x128xf32>,
    %c5_i32 = arith.constant 5 : i32
    %263 = arith.index_cast %c5_i32 : i32 to index
    %c0_56 = arith.constant 0 : index
    %c0_57 = arith.constant 0 : index
    %264 = vector.load %arg2[%263, %c0_56, %c0_57] : memref<8x8x128xf32, #tpu.memory_space<vmem>>, vector<1x8x128xf32>
    %265 = vector.shape_cast %264 : vector<1x8x128xf32> to vector<8x128xf32>
    %cst_58 = arith.constant dense<0.000000e+00> : vector<8x128xf32>
    %266 = tpu.matmul %238, %1, %cst_58 {dimension_numbers = #tpu.dot_dimension_numbers<[1], [0], [0], [1], [0, 0, 1, 1], [], []>} : vector<8x32xf32>, vector<32x128xf32>, vector<8x128xf32> -> vector<8x128xf32>
    %267 = arith.addf %265, %266 : vector<8x128xf32>
    %268 = math.tanh %267 : vector<8x128xf32>
    %269 = arith.negf %267 : vector<8x128xf32>
    %270 = math.exp %269 : vector<8x128xf32>
    %cst_59 = arith.constant 1.000000e+00 : f32
    %271 = vector.broadcast %cst_59 : f32 to vector<8x128xf32>
    %272 = arith.addf %271, %270 : vector<8x128xf32>
    %273 = arith.divf %271, %272 : vector<8x128xf32>
    %274 = arith.select %9, %268, %273 : vector<8x128xi1>, vector<8x128xf32>
    %275 = vector.extract_strided_slice %274 {offsets = [0, 0], sizes = [8, 32], strides = [1, 1]} : vector<8x128xf32> to vector<8x32xf32>
    %276 = vector.extract_strided_slice %274 {offsets = [0, 32], sizes = [8, 32], strides = [1, 1]} : vector<8x128xf32> to vector<8x32xf32>
    %277 = vector.extract_strided_slice %274 {offsets = [0, 64], sizes = [8, 32], strides = [1, 1]} : vector<8x128xf32> to vector<8x32xf32>
    %278 = vector.extract_strided_slice %274 {offsets = [0, 96], sizes = [8, 32], strides = [1, 1]} : vector<8x128xf32> to vector<8x32xf32>
    %279 = arith.mulf %276, %241 : vector<8x32xf32>
    %280 = arith.mulf %275, %277 : vector<8x32xf32>
    %281 = arith.addf %279, %280 : vector<8x32xf32>
    %282 = math.tanh %281 : vector<8x32xf32>
    %283 = arith.mulf %278, %282 : vector<8x32xf32>
    %284 = vector.broadcast %c5_i32 : i32 to vector<8x1xi32>
    %285 = arith.cmpi slt, %284, %0 : vector<8x1xi32>
    %286 = vector.shape_cast %285 : vector<8x1xi1> to vector<8x1xi1>
    %287 = vector.broadcast %286 : vector<8x1xi1> to vector<8x32xi1>
    %288 = arith.select %287, %283, %238 : vector<8x32xi1>, vector<8x32xf32>
    %289 = vector.shape_cast %285 : vector<8x1xi1> to vector<8x1xi1>
    %290 = vector.broadcast %289 : vector<8x1xi1> to vector<8x32xi1>
    %291 = arith.select %290, %281, %241 : vector<8x32xi1>, vector<8x32xf32>
    %292 = vector.shape_cast %285 : vector<8x1xi1> to vector<8x1xi1>
    %293 = vector.broadcast %292 : vector<8x1xi1> to vector<8x32xi1>
    %294 = arith.select %293, %283, %10 : vector<8x32xi1>, vector<8x32xf32>
    %cst_60 = arith.constant dense<0.000000e+00> : vector<8x128xf32>
    %295 = tpu.matmul %294, %2, %cst_60 {dimension_numbers = #tpu.dot_dimension_numbers<[1], [0], [0], [1], [0, 0, 1, 1], [], []>} : vector<8x32xf32>, vector<32x128xf32>, vector<8x128xf32> -> vector<8x128xf32>
    %296 = vector.broadcast %3 : vector<1x128xf32> to vector<8x128xf32>
    %297 = arith.addf %295, %296 : vector<8x128xf32>
    %cst_61 = arith.constant dense<0xFF800000> : vector<8xf32>
    %298 = vector.multi_reduction <maximumf>, %297, %cst_61 [1] : vector<8x128xf32> to vector<8xf32>
    %299 = vector.shape_cast %298 : vector<8xf32> to vector<8x1xf32>
    %300 = vector.broadcast %299 : vector<8x1xf32> to vector<8x128xf32>
    %301 = arith.subf %297, %300 : vector<8x128xf32>
    %302 = math.exp %301 : vector<8x128xf32>
    %cst_62 = arith.constant dense<0.000000e+00> : vector<8xf32>
    %303 = vector.multi_reduction <add>, %302, %cst_62 [1] : vector<8x128xf32> to vector<8xf32>
    %304 = vector.shape_cast %303 : vector<8xf32> to vector<8x1xf32>
    %305 = math.log %304 : vector<8x1xf32>
    %306 = arith.addf %299, %305 : vector<8x1xf32>
    %307 = vector.broadcast %306 : vector<8x1xf32> to vector<8x128xf32>
    %308 = arith.subf %297, %307 : vector<8x128xf32>
    %309 = arith.index_cast %c5_i32 : i32 to index
    %c0_63 = arith.constant 0 : index
    %c0_64 = arith.constant 0 : index
    %310 = vector.load %arg8[%309, %c0_63, %c0_64] : memref<8x8x128xf32, #tpu.memory_space<vmem>>, vector<1x8x128xf32>
    %311 = vector.shape_cast %310 : vector<1x8x128xf32> to vector<8x128xf32>
    %312 = vector.shape_cast %308 : vector<8x128xf32> to vector<1x8x128xf32>
    tpu.vector_store %arg8[%309, %c0_63, %c0_64], %312 {strides = array<i32>} : memref<8x8x128xf32, #tpu.memory_space<vmem>>, vector<1x8x128xf32>,
    %c6_i32 = arith.constant 6 : i32
    %313 = arith.index_cast %c6_i32 : i32 to index
    %c0_65 = arith.constant 0 : index
    %c0_66 = arith.constant 0 : index
    %314 = vector.load %arg2[%313, %c0_65, %c0_66] : memref<8x8x128xf32, #tpu.memory_space<vmem>>, vector<1x8x128xf32>
    %315 = vector.shape_cast %314 : vector<1x8x128xf32> to vector<8x128xf32>
    %cst_67 = arith.constant dense<0.000000e+00> : vector<8x128xf32>
    %316 = tpu.matmul %288, %1, %cst_67 {dimension_numbers = #tpu.dot_dimension_numbers<[1], [0], [0], [1], [0, 0, 1, 1], [], []>} : vector<8x32xf32>, vector<32x128xf32>, vector<8x128xf32> -> vector<8x128xf32>
    %317 = arith.addf %315, %316 : vector<8x128xf32>
    %318 = math.tanh %317 : vector<8x128xf32>
    %319 = arith.negf %317 : vector<8x128xf32>
    %320 = math.exp %319 : vector<8x128xf32>
    %cst_68 = arith.constant 1.000000e+00 : f32
    %321 = vector.broadcast %cst_68 : f32 to vector<8x128xf32>
    %322 = arith.addf %321, %320 : vector<8x128xf32>
    %323 = arith.divf %321, %322 : vector<8x128xf32>
    %324 = arith.select %9, %318, %323 : vector<8x128xi1>, vector<8x128xf32>
    %325 = vector.extract_strided_slice %324 {offsets = [0, 0], sizes = [8, 32], strides = [1, 1]} : vector<8x128xf32> to vector<8x32xf32>
    %326 = vector.extract_strided_slice %324 {offsets = [0, 32], sizes = [8, 32], strides = [1, 1]} : vector<8x128xf32> to vector<8x32xf32>
    %327 = vector.extract_strided_slice %324 {offsets = [0, 64], sizes = [8, 32], strides = [1, 1]} : vector<8x128xf32> to vector<8x32xf32>
    %328 = vector.extract_strided_slice %324 {offsets = [0, 96], sizes = [8, 32], strides = [1, 1]} : vector<8x128xf32> to vector<8x32xf32>
    %329 = arith.mulf %326, %291 : vector<8x32xf32>
    %330 = arith.mulf %325, %327 : vector<8x32xf32>
    %331 = arith.addf %329, %330 : vector<8x32xf32>
    %332 = math.tanh %331 : vector<8x32xf32>
    %333 = arith.mulf %328, %332 : vector<8x32xf32>
    %334 = vector.broadcast %c6_i32 : i32 to vector<8x1xi32>
    %335 = arith.cmpi slt, %334, %0 : vector<8x1xi32>
    %336 = vector.shape_cast %335 : vector<8x1xi1> to vector<8x1xi1>
    %337 = vector.broadcast %336 : vector<8x1xi1> to vector<8x32xi1>
    %338 = arith.select %337, %333, %288 : vector<8x32xi1>, vector<8x32xf32>
    %339 = vector.shape_cast %335 : vector<8x1xi1> to vector<8x1xi1>
    %340 = vector.broadcast %339 : vector<8x1xi1> to vector<8x32xi1>
    %341 = arith.select %340, %331, %291 : vector<8x32xi1>, vector<8x32xf32>
    %342 = vector.shape_cast %335 : vector<8x1xi1> to vector<8x1xi1>
    %343 = vector.broadcast %342 : vector<8x1xi1> to vector<8x32xi1>
    %344 = arith.select %343, %333, %10 : vector<8x32xi1>, vector<8x32xf32>
    %cst_69 = arith.constant dense<0.000000e+00> : vector<8x128xf32>
    %345 = tpu.matmul %344, %2, %cst_69 {dimension_numbers = #tpu.dot_dimension_numbers<[1], [0], [0], [1], [0, 0, 1, 1], [], []>} : vector<8x32xf32>, vector<32x128xf32>, vector<8x128xf32> -> vector<8x128xf32>
    %346 = vector.broadcast %3 : vector<1x128xf32> to vector<8x128xf32>
    %347 = arith.addf %345, %346 : vector<8x128xf32>
    %cst_70 = arith.constant dense<0xFF800000> : vector<8xf32>
    %348 = vector.multi_reduction <maximumf>, %347, %cst_70 [1] : vector<8x128xf32> to vector<8xf32>
    %349 = vector.shape_cast %348 : vector<8xf32> to vector<8x1xf32>
    %350 = vector.broadcast %349 : vector<8x1xf32> to vector<8x128xf32>
    %351 = arith.subf %347, %350 : vector<8x128xf32>
    %352 = math.exp %351 : vector<8x128xf32>
    %cst_71 = arith.constant dense<0.000000e+00> : vector<8xf32>
    %353 = vector.multi_reduction <add>, %352, %cst_71 [1] : vector<8x128xf32> to vector<8xf32>
    %354 = vector.shape_cast %353 : vector<8xf32> to vector<8x1xf32>
    %355 = math.log %354 : vector<8x1xf32>
    %356 = arith.addf %349, %355 : vector<8x1xf32>
    %357 = vector.broadcast %356 : vector<8x1xf32> to vector<8x128xf32>
    %358 = arith.subf %347, %357 : vector<8x128xf32>
    %359 = arith.index_cast %c6_i32 : i32 to index
    %c0_72 = arith.constant 0 : index
    %c0_73 = arith.constant 0 : index
    %360 = vector.load %arg8[%359, %c0_72, %c0_73] : memref<8x8x128xf32, #tpu.memory_space<vmem>>, vector<1x8x128xf32>
    %361 = vector.shape_cast %360 : vector<1x8x128xf32> to vector<8x128xf32>
    %362 = vector.shape_cast %358 : vector<8x128xf32> to vector<1x8x128xf32>
    tpu.vector_store %arg8[%359, %c0_72, %c0_73], %362 {strides = array<i32>} : memref<8x8x128xf32, #tpu.memory_space<vmem>>, vector<1x8x128xf32>,
    %c7_i32 = arith.constant 7 : i32
    %363 = arith.index_cast %c7_i32 : i32 to index
    %c0_74 = arith.constant 0 : index
    %c0_75 = arith.constant 0 : index
    %364 = vector.load %arg2[%363, %c0_74, %c0_75] : memref<8x8x128xf32, #tpu.memory_space<vmem>>, vector<1x8x128xf32>
    %365 = vector.shape_cast %364 : vector<1x8x128xf32> to vector<8x128xf32>
    %cst_76 = arith.constant dense<0.000000e+00> : vector<8x128xf32>
    %366 = tpu.matmul %338, %1, %cst_76 {dimension_numbers = #tpu.dot_dimension_numbers<[1], [0], [0], [1], [0, 0, 1, 1], [], []>} : vector<8x32xf32>, vector<32x128xf32>, vector<8x128xf32> -> vector<8x128xf32>
    %367 = arith.addf %365, %366 : vector<8x128xf32>
    %368 = math.tanh %367 : vector<8x128xf32>
    %369 = arith.negf %367 : vector<8x128xf32>
    %370 = math.exp %369 : vector<8x128xf32>
    %cst_77 = arith.constant 1.000000e+00 : f32
    %371 = vector.broadcast %cst_77 : f32 to vector<8x128xf32>
    %372 = arith.addf %371, %370 : vector<8x128xf32>
    %373 = arith.divf %371, %372 : vector<8x128xf32>
    %374 = arith.select %9, %368, %373 : vector<8x128xi1>, vector<8x128xf32>
    %375 = vector.extract_strided_slice %374 {offsets = [0, 0], sizes = [8, 32], strides = [1, 1]} : vector<8x128xf32> to vector<8x32xf32>
    %376 = vector.extract_strided_slice %374 {offsets = [0, 32], sizes = [8, 32], strides = [1, 1]} : vector<8x128xf32> to vector<8x32xf32>
    %377 = vector.extract_strided_slice %374 {offsets = [0, 64], sizes = [8, 32], strides = [1, 1]} : vector<8x128xf32> to vector<8x32xf32>
    %378 = vector.extract_strided_slice %374 {offsets = [0, 96], sizes = [8, 32], strides = [1, 1]} : vector<8x128xf32> to vector<8x32xf32>
    %379 = arith.mulf %376, %341 : vector<8x32xf32>
    %380 = arith.mulf %375, %377 : vector<8x32xf32>
    %381 = arith.addf %379, %380 : vector<8x32xf32>
    %382 = math.tanh %381 : vector<8x32xf32>
    %383 = arith.mulf %378, %382 : vector<8x32xf32>
    %384 = vector.broadcast %c7_i32 : i32 to vector<8x1xi32>
    %385 = arith.cmpi slt, %384, %0 : vector<8x1xi32>
    %386 = vector.shape_cast %385 : vector<8x1xi1> to vector<8x1xi1>
    %387 = vector.broadcast %386 : vector<8x1xi1> to vector<8x32xi1>
    %388 = arith.select %387, %383, %338 : vector<8x32xi1>, vector<8x32xf32>
    %389 = vector.shape_cast %385 : vector<8x1xi1> to vector<8x1xi1>
    %390 = vector.broadcast %389 : vector<8x1xi1> to vector<8x32xi1>
    %391 = arith.select %390, %381, %341 : vector<8x32xi1>, vector<8x32xf32>
    %392 = vector.shape_cast %385 : vector<8x1xi1> to vector<8x1xi1>
    %393 = vector.broadcast %392 : vector<8x1xi1> to vector<8x32xi1>
    %394 = arith.select %393, %383, %10 : vector<8x32xi1>, vector<8x32xf32>
    %cst_78 = arith.constant dense<0.000000e+00> : vector<8x128xf32>
    %395 = tpu.matmul %394, %2, %cst_78 {dimension_numbers = #tpu.dot_dimension_numbers<[1], [0], [0], [1], [0, 0, 1, 1], [], []>} : vector<8x32xf32>, vector<32x128xf32>, vector<8x128xf32> -> vector<8x128xf32>
    %396 = vector.broadcast %3 : vector<1x128xf32> to vector<8x128xf32>
    %397 = arith.addf %395, %396 : vector<8x128xf32>
    %cst_79 = arith.constant dense<0xFF800000> : vector<8xf32>
    %398 = vector.multi_reduction <maximumf>, %397, %cst_79 [1] : vector<8x128xf32> to vector<8xf32>
    %399 = vector.shape_cast %398 : vector<8xf32> to vector<8x1xf32>
    %400 = vector.broadcast %399 : vector<8x1xf32> to vector<8x128xf32>
    %401 = arith.subf %397, %400 : vector<8x128xf32>
    %402 = math.exp %401 : vector<8x128xf32>
    %cst_80 = arith.constant dense<0.000000e+00> : vector<8xf32>
    %403 = vector.multi_reduction <add>, %402, %cst_80 [1] : vector<8x128xf32> to vector<8xf32>
    %404 = vector.shape_cast %403 : vector<8xf32> to vector<8x1xf32>
    %405 = math.log %404 : vector<8x1xf32>
    %406 = arith.addf %399, %405 : vector<8x1xf32>
    %407 = vector.broadcast %406 : vector<8x1xf32> to vector<8x128xf32>
    %408 = arith.subf %397, %407 : vector<8x128xf32>
    %409 = arith.index_cast %c7_i32 : i32 to index
    %c0_81 = arith.constant 0 : index
    %c0_82 = arith.constant 0 : index
    %410 = vector.load %arg8[%409, %c0_81, %c0_82] : memref<8x8x128xf32, #tpu.memory_space<vmem>>, vector<1x8x128xf32>
    %411 = vector.shape_cast %410 : vector<1x8x128xf32> to vector<8x128xf32>
    %412 = vector.shape_cast %408 : vector<8x128xf32> to vector<1x8x128xf32>
    tpu.vector_store %arg8[%409, %c0_81, %c0_82], %412 {strides = array<i32>} : memref<8x8x128xf32, #tpu.memory_space<vmem>>, vector<1x8x128xf32>,
    %c8_i32 = arith.constant 8 : i32
    %c0_83 = arith.constant 0 : index
    %c0_84 = arith.constant 0 : index
    %413 = vector.load %arg9[%c0_83, %c0_84] : memref<8x32xf32, #tpu.memory_space<vmem>>, vector<8x32xf32>
    tpu.vector_store %arg9[%c0_83, %c0_84], %388 {strides = array<i32>} : memref<8x32xf32, #tpu.memory_space<vmem>>, vector<8x32xf32>,
    %c0_85 = arith.constant 0 : index
    %c0_86 = arith.constant 0 : index
    %414 = vector.load %arg10[%c0_85, %c0_86] : memref<8x32xf32, #tpu.memory_space<vmem>>, vector<8x32xf32>
    tpu.vector_store %arg10[%c0_85, %c0_86], %391 {strides = array<i32>} : memref<8x32xf32, #tpu.memory_space<vmem>>, vector<8x32xf32>,
    return
  }
  func.func @transform_0(%arg0: i32) -> (i32, i32) {
    %c0_i32 = arith.constant 0 : i32
    %c0_i32_0 = arith.constant 0 : i32
    return %arg0, %c0_i32 : i32, i32
  }
  func.func @transform_1(%arg0: i32) -> (i32, i32, i32) {
    %c0_i32 = arith.constant 0 : i32
    %c0_i32_0 = arith.constant 0 : i32
    %c0_i32_1 = arith.constant 0 : i32
    return %c0_i32, %arg0, %c0_i32_0 : i32, i32, i32
  }
  func.func @transform_2(%arg0: i32) -> (i32, i32) {
    %c0_i32 = arith.constant 0 : i32
    %c0_i32_0 = arith.constant 0 : i32
    return %arg0, %c0_i32 : i32, i32
  }
  func.func @transform_3(%arg0: i32) -> (i32, i32) {
    %c0_i32 = arith.constant 0 : i32
    %c0_i32_0 = arith.constant 0 : i32
    return %arg0, %c0_i32 : i32, i32
  }
  func.func @transform_4(%arg0: i32) -> (i32, i32) {
    %c0_i32 = arith.constant 0 : i32
    %c0_i32_0 = arith.constant 0 : i32
    %c0_i32_1 = arith.constant 0 : i32
    return %c0_i32, %c0_i32_0 : i32, i32
  }
  func.func @transform_5(%arg0: i32) -> (i32, i32) {
    %c0_i32 = arith.constant 0 : i32
    %c0_i32_0 = arith.constant 0 : i32
    %c0_i32_1 = arith.constant 0 : i32
    return %c0_i32, %c0_i32_0 : i32, i32
  }
  func.func @transform_6(%arg0: i32) -> (i32, i32) {
    %c0_i32 = arith.constant 0 : i32
    %c0_i32_0 = arith.constant 0 : i32
    %c0_i32_1 = arith.constant 0 : i32
    return %c0_i32, %c0_i32_0 : i32, i32
  }
  func.func @transform_7(%arg0: i32) -> (i32, i32, i32) {
    %c0_i32 = arith.constant 0 : i32
    %c0_i32_0 = arith.constant 0 : i32
    %c0_i32_1 = arith.constant 0 : i32
    return %c0_i32, %arg0, %c0_i32_0 : i32, i32, i32
  }
  func.func @transform_8(%arg0: i32) -> (i32, i32) {
    %c0_i32 = arith.constant 0 : i32
    %c0_i32_0 = arith.constant 0 : i32
    return %arg0, %c0_i32 : i32, i32
  }
  func.func @transform_9(%arg0: i32) -> (i32, i32) {
    %c0_i32 = arith.constant 0 : i32
    %c0_i32_0 = arith.constant 0 : i32
    return %arg0, %c0_i32 : i32, i32
  }
}

</mosaic_0001>

<llo_original>
// kernel: decoder_lstm_forward.1
$region0: #{decoder_lstm_forward.1}
  #allocation0 [shape = 'u32[]', space=smem, size = 0x4, offset = 0x4, fixed_abs, tag = 'smem constant byte address 0x4 - core index']
  #allocation1 [shape = 'u32[144,128]{1,0:T(1,128)}', space=vmem, size = 0x12000, scoped, tag = 'internal scratch']
  %s0 = inlined_call_operand.vmem [shape: s32[8,1], index: 0, kind: input, shape index: {}]
  %s1 = inlined_call_operand.vmem [shape: f32[8,8,128], index: 1, kind: input, shape index: {}]
  %s2 = inlined_call_operand.vmem [shape: f32[8,32], index: 2, kind: input, shape index: {}]
  %s3 = inlined_call_operand.vmem [shape: f32[8,32], index: 3, kind: input, shape index: {}]
  %s4 = inlined_call_operand.vmem [shape: f32[32,128], index: 4, kind: input, shape index: {}]
  %s5 = inlined_call_operand.vmem [shape: f32[32,128], index: 5, kind: input, shape index: {}]
  %s6 = inlined_call_operand.vmem [shape: f32[1,128], index: 6, kind: input, shape index: {}]
  %s7 = inlined_call_operand.vmem [shape: f32[8,8,128], index: 7, kind: output, shape index: {0}]
  %s8 = inlined_call_operand.vmem [shape: f32[8,32], index: 8, kind: output, shape index: {1}]
  %s9 = inlined_call_operand.vmem [shape: f32[8,32], index: 9, kind: output, shape index: {2}]
  %10 = xla_tuple %s7, %s8, %s9
  %s11 = sld [smem:[#allocation0]]
  $region54: #{decoder_lstm_forward.1} parent=0
    _
  %s13 = ssub.s32 1, %s11
  %s14 = scalar_select 0, %s13, %s11
  // Predicated region
  $region2: #{decoder_lstm_forward.1} parent=0 // pred_check
    _
  $region3: #{decoder_lstm_forward.1} parent=0 // pred_check_branch
    %16 = sbr.rel (0) target = $region5
  $region4: #{decoder_lstm_forward.1} parent=0 // pred_region
    _
  $region5: #{decoder_lstm_forward.1} parent=0 // pred_fallthru
    _
  // Predicated region
  $region6: #{decoder_lstm_forward.1} parent=0 // pred_check
    _
  $region7: #{decoder_lstm_forward.1} parent=0 // pred_check_branch
    %18 = sbr.rel (0) target = $region9
  $region8: #{decoder_lstm_forward.1} parent=0 // pred_region
    _
  $region9: #{decoder_lstm_forward.1} parent=0 // pred_fallthru
    _
  // Predicated region
  $region10: #{decoder_lstm_forward.1} parent=0 // pred_check
    _
  $region11: #{decoder_lstm_forward.1} parent=0 // pred_check_branch
    %20 = sbr.rel (0) target = $region13
  $region12: #{decoder_lstm_forward.1} parent=0 // pred_region
    _
  $region13: #{decoder_lstm_forward.1} parent=0 // pred_fallthru
    _
  // Predicated region
  $region14: #{decoder_lstm_forward.1} parent=0 // pred_check
    _
  $region15: #{decoder_lstm_forward.1} parent=0 // pred_check_branch
    %22 = sbr.rel (0) target = $region17
  $region16: #{decoder_lstm_forward.1} parent=0 // pred_region
    _
  $region17: #{decoder_lstm_forward.1} parent=0 // pred_fallthru
    _
  // Predicated region
  $region18: #{decoder_lstm_forward.1} parent=0 // pred_check
    _
  $region19: #{decoder_lstm_forward.1} parent=0 // pred_check_branch
    %24 = sbr.rel (0) target = $region21
  $region20: #{decoder_lstm_forward.1} parent=0 // pred_region
    _
  $region21: #{decoder_lstm_forward.1} parent=0 // pred_fallthru
    _
  // Predicated region
  $region22: #{decoder_lstm_forward.1} parent=0 // pred_check
    _
  $region23: #{decoder_lstm_forward.1} parent=0 // pred_check_branch
    %26 = sbr.rel (0) target = $region25
  $region24: #{decoder_lstm_forward.1} parent=0 // pred_region
    _
  $region25: #{decoder_lstm_forward.1} parent=0 // pred_fallthru
    _
  // Predicated region
  $region26: #{decoder_lstm_forward.1} parent=0 // pred_check
    _
  $region27: #{decoder_lstm_forward.1} parent=0 // pred_check_branch
    %28 = sbr.rel (0) target = $region29
  $region28: #{decoder_lstm_forward.1} parent=0 // pred_region
    _
  $region29: #{decoder_lstm_forward.1} parent=0 // pred_fallthru
    _
  %v29 = vld [vmem:[%s0] sm:$0xff]
  %v30 = vld [vmem:[%s4] sm:$0xff]
  %v31 = vld [vmem:[%s4 + $0x8] sm:$0xff]
  %v32 = vld [vmem:[%s4 + $0x10] sm:$0xff]
  %v33 = vld [vmem:[%s4 + $0x18] sm:$0xff]
  %v34 = vld [vmem:[%s5] sm:$0xff]
  %v35 = vld [vmem:[%s5 + $0x8] sm:$0xff]
  %v36 = vld [vmem:[%s5 + $0x10] sm:$0xff]
  %v37 = vld [vmem:[%s5 + $0x18] sm:$0xff]
  %v38 = vld [vmem:[%s6] sm:$0x1]
  %v39 = vlaneseq
  %v40 = vand.u32 %v39, 127
  %vm41 = vcmp.ge.s32.totalorder %v40, 64
  %vm42 = vcmp.lt.s32.totalorder %v40, 96
  %vm43 = vmand %vm41, %vm42
  %v44 = vld [vmem:[%s2] sm:$0xff]
  %v45 = vld [vmem:[%s3] sm:$0xff]
  %v46 = vld [vmem:[%s1] sm:$0xff]
  %vm47 = vcmask 261120
  %v49 = vsel %vm47, %v44, 0
  %51 = vmatprep.subr.mxu0 0.0
  %52 = vmatpush1.msra.mxu0 %v30
  %53 = vmatprep.subr.mxu0 0.0
  %54 = vmatpush1.msra.mxu0 %v31
  %55 = vmatprep.subr.mxu0 0.0
  %56 = vmatpush1.msra.mxu0 %v32
  %57 = vmatprep.subr.mxu0 0.0
  %58 = vmatpush1.msra.mxu0 %v33
  %59 = vmatprep.subr.mxu0 0.0
  %60 = vmatpush1.msra.mxu0 0.0
  %61 = vmatprep.subr.mxu0 0.0
  %62 = vmatpush1.msra.mxu0 0.0
  %63 = vmatprep.subr.mxu0 0.0
  %64 = vmatpush1.msra.mxu0 0.0
  %65 = vmatprep.subr.mxu0 0.0
  %66 = vmatpush1.msra.mxu0 0.0
  %67 = vmatprep.subr.mxu0 0.0
  %68 = vmatpush1.msra.mxu0 0.0
  %69 = vmatprep.subr.mxu0 0.0
  %70 = vmatpush1.msra.mxu0 0.0
  %71 = vmatprep.subr.mxu0 0.0
  %72 = vmatpush1.msra.mxu0 0.0
  %73 = vmatprep.subr.mxu0 0.0
  %74 = vmatpush1.msra.mxu0 0.0
  %75 = vmatprep.subr.mxu0 0.0
  %76 = vmatpush1.msra.mxu0 0.0
  %77 = vmatprep.subr.mxu0 0.0
  %78 = vmatpush1.msra.mxu0 0.0
  %79 = vmatprep.subr.mxu0 0.0
  %80 = vmatpush1.msra.mxu0 0.0
  %81 = vmatprep.subr.mxu0 0.0
  %82 = vmatpush1.msra.mxu0 0.0
  %83 = vmatprep.subr.mxu0 0.0
  %84 = vmatpush1.msra.mxu0 0.0
  %85 = vmatprep.subr.mxu0 0.0
  %86 = vmatpush1.msra.mxu0 0.0
  %87 = vmatprep.subr.mxu0 0.0
  %88 = vmatpush1.msra.mxu0 0.0
  %89 = vmatprep.subr.mxu0 0.0
  %90 = vmatpush1.msra.mxu0 0.0
  %91 = vmatprep.subr.mxu0 0.0
  %92 = vmatpush1.msra.mxu0 0.0
  %93 = vmatprep.subr.mxu0 0.0
  %94 = vmatpush1.msra.mxu0 0.0
  %95 = vmatprep.subr.mxu0 0.0
  %96 = vmatpush1.msra.mxu0 0.0
  %97 = vmatprep.subr.mxu0 0.0
  %98 = vmatpush1.msra.mxu0 0.0
  %99 = vmatprep.subr.mxu0 0.0
  %100 = vmatpush1.msra.mxu0 0.0
  %101 = vmatprep.subr.mxu0 0.0
  %102 = vmatpush1.msra.mxu0 0.0
  %103 = vmatprep.subr.mxu0 0.0
  %104 = vmatpush1.msra.mxu0 0.0
  %105 = vmatprep.subr.mxu0 0.0
  %106 = vmatpush1.msra.mxu0 0.0
  %107 = vmatprep.subr.mxu0 0.0
  %108 = vmatpush1.msra.mxu0 0.0
  %109 = vmatprep.subr.mxu0 0.0
  %110 = vmatpush1.msra.mxu0 0.0
  %111 = vmatprep.subr.mxu0 0.0
  %112 = vmatpush1.msra.mxu0 0.0
  %113 = vmatprep.subr.mxu0 0.0
  %114 = vmatpush1.msra.mxu0 0.0
  %115 = vmatprep.mubr.f32.mxu0 0.0
  %116 = vmatmul.mubr.f32.gmra.mrb[0].mxu0 %v49
  %v117 = vpop.f32.mrb[0].mxu0
  %v118 = vadd.f32 0.0, %v117
  %v119 = vpop.f32.mrb[0].mxu0
  %120 = vdwg.mxu0
  %v121 = vadd.f32 %v46, %v118
  %v122 = vtanh.pop %v121
  %v123 = vxor.u32 %v121, 2147483648
  %v124 = vmul.f32 %v123, 1.442695
  %v125 = vpow.pop %v124
  %v126 = vadd.f32 %v125, 1.0
  %v127 = vrcp.pop %v126
  %v128 = vmul.f32 1.0, %v127
  %v129 = vsel %vm43, %v122, %v128
  %131 = vrot.lane.b32.xlu0 %v45, 32
  %v132 = vpop.permute.xlu0 %131
  %v134 = vmul.f32 %v129, %v132
  %136 = vrot.lane.b32.xlu0 %v129, 64
  %v137 = vpop.permute.xlu0 %136
  %v139 = vmul.f32 %v129, %v137
  %141 = vrot.lane.b32.xlu0 %v139, 32
  %v142 = vpop.permute.xlu0 %141
  %v144 = vadd.f32 %v134, %v142
  %v145 = vtanh.pop %v144
  %147 = vrot.lane.b32.xlu0 %v145, 64
  %v148 = vpop.permute.xlu0 %147
  %v150 = vmul.f32 %v129, %v148
  %vm151 = vcmp.gt.s32.totalorder %v29, 0
  %v152 = vsel %vm151, 1, 0
  %153 = vset.pattern.permute.xlu0 0
  %154 = vperm.xlu0 %153, %v152
  %v155 = vpop.permute.xlu0 %154
  %vm156 = vcmp.eq.s32.totalorder %v155, 1
  %157 = vrot.lane.b32.xlu0 %v44, 96
  %v158 = vpop.permute.xlu0 %157
  %v160 = vsel %vm156, %v150, %v158
  %v161 = vsel %vm156, %v144, %v132
  %v162 = vsel %vm156, %v150, 0.0
  %v164 = vlaneseq
  %v165 = vshrl.u32 %v164, 7
  %v166 = vsub.s32 0, %v165
  %v167 = vrot.slane %v38, %v166
  %170 = vrot.lane.b32.xlu0 %v162, 32
  %v171 = vpop.permute.xlu0 %170
  %v172 = vsel %vm47, %v171, 0
  %174 = vmatprep.subr.mxu0 0.0
  %175 = vmatpush1.msra.mxu0 %v34
  %176 = vmatprep.subr.mxu0 0.0
  %177 = vmatpush1.msra.mxu0 %v35
  %178 = vmatprep.subr.mxu0 0.0
  %179 = vmatpush1.msra.mxu0 %v36
  %180 = vmatprep.subr.mxu0 0.0
  %181 = vmatpush1.msra.mxu0 %v37
  %182 = vmatprep.subr.mxu0 0.0
  %183 = vmatpush1.msra.mxu0 0.0
  %184 = vmatprep.subr.mxu0 0.0
  %185 = vmatpush1.msra.mxu0 0.0
  %186 = vmatprep.subr.mxu0 0.0
  %187 = vmatpush1.msra.mxu0 0.0
  %188 = vmatprep.subr.mxu0 0.0
  %189 = vmatpush1.msra.mxu0 0.0
  %190 = vmatprep.subr.mxu0 0.0
  %191 = vmatpush1.msra.mxu0 0.0
  %192 = vmatprep.subr.mxu0 0.0
  %193 = vmatpush1.msra.mxu0 0.0
  %194 = vmatprep.subr.mxu0 0.0
  %195 = vmatpush1.msra.mxu0 0.0
  %196 = vmatprep.subr.mxu0 0.0
  %197 = vmatpush1.msra.mxu0 0.0
  %198 = vmatprep.subr.mxu0 0.0
  %199 = vmatpush1.msra.mxu0 0.0
  %200 = vmatprep.subr.mxu0 0.0
  %201 = vmatpush1.msra.mxu0 0.0
  %202 = vmatprep.subr.mxu0 0.0
  %203 = vmatpush1.msra.mxu0 0.0
  %204 = vmatprep.subr.mxu0 0.0
  %205 = vmatpush1.msra.mxu0 0.0
  %206 = vmatprep.subr.mxu0 0.0
  %207 = vmatpush1.msra.mxu0 0.0
  %208 = vmatprep.subr.mxu0 0.0
  %209 = vmatpush1.msra.mxu0 0.0
  %210 = vmatprep.subr.mxu0 0.0
  %211 = vmatpush1.msra.mxu0 0.0
  %212 = vmatprep.subr.mxu0 0.0
  %213 = vmatpush1.msra.mxu0 0.0
  %214 = vmatprep.subr.mxu0 0.0
  %215 = vmatpush1.msra.mxu0 0.0
  %216 = vmatprep.subr.mxu0 0.0
  %217 = vmatpush1.msra.mxu0 0.0
  %218 = vmatprep.subr.mxu0 0.0
  %219 = vmatpush1.msra.mxu0 0.0
  %220 = vmatprep.subr.mxu0 0.0
  %221 = vmatpush1.msra.mxu0 0.0
  %222 = vmatprep.subr.mxu0 0.0
  %223 = vmatpush1.msra.mxu0 0.0
  %224 = vmatprep.subr.mxu0 0.0
  %225 = vmatpush1.msra.mxu0 0.0
  %226 = vmatprep.subr.mxu0 0.0
  %227 = vmatpush1.msra.mxu0 0.0
  %228 = vmatprep.subr.mxu0 0.0
  %229 = vmatpush1.msra.mxu0 0.0
  %230 = vmatprep.subr.mxu0 0.0
  %231 = vmatpush1.msra.mxu0 0.0
  %232 = vmatprep.subr.mxu0 0.0
  %233 = vmatpush1.msra.mxu0 0.0
  %234 = vmatprep.subr.mxu0 0.0
  %235 = vmatpush1.msra.mxu0 0.0
  %236 = vmatprep.subr.mxu0 0.0
  %237 = vmatpush1.msra.mxu0 0.0
  %238 = vmatprep.mubr.f32.mxu0 0.0
  %239 = vmatmul.mubr.f32.gmra.mrb[0].mxu0 %v172
  %v240 = vpop.f32.mrb[0].mxu0
  %v241 = vadd.f32 %v167, %v240
  %v242 = vpop.f32.mrb[0].mxu0
  %243 = vdwg.mxu0
  %244 = vmax.xlane.f32.xlu0 %v241
  %v245 = vpop.xlane.xlu0 %244
  %v246 = vsub.f32 %v241, %v245
  %v247 = vmul.f32 %v246, 1.442695
  %v248 = vpow.pop %v247
  %249 = vadd.xlane.f32.xlu0 %v248
  %v250 = vpop.xlane.xlu0 %249
  %v251 = vlog2.pop %v250
  %v252 = vmul.f32 %v251, 0.6931472
  %v253 = vadd.f32 %v245, %v252
  %v254 = vsub.f32 %v241, %v253
  %255 = vst [vmem:[%s7] sm:$0xff] %v254
  %s256 = scalar_lea.vmem %s1, 8
  %v257 = vld [vmem:[%s256] sm:$0xff]
  %259 = vrot.lane.b32.xlu0 %v160, 32
  %v260 = vpop.permute.xlu0 %259
  %v261 = vsel %vm47, %v260, 0
  %263 = vmatprep.subr.mxu0 0.0
  %264 = vmatpush1.msra.mxu0 %v30
  %265 = vmatprep.subr.mxu0 0.0
  %266 = vmatpush1.msra.mxu0 %v31
  %267 = vmatprep.subr.mxu0 0.0
  %268 = vmatpush1.msra.mxu0 %v32
  %269 = vmatprep.subr.mxu0 0.0
  %270 = vmatpush1.msra.mxu0 %v33
  %271 = vmatprep.subr.mxu0 0.0
  %272 = vmatpush1.msra.mxu0 0.0
  %273 = vmatprep.subr.mxu0 0.0
  %274 = vmatpush1.msra.mxu0 0.0
  %275 = vmatprep.subr.mxu0 0.0
  %276 = vmatpush1.msra.mxu0 0.0
  %277 = vmatprep.subr.mxu0 0.0
  %278 = vmatpush1.msra.mxu0 0.0
  %279 = vmatprep.subr.mxu0 0.0
  %280 = vmatpush1.msra.mxu0 0.0
  %281 = vmatprep.subr.mxu0 0.0
  %282 = vmatpush1.msra.mxu0 0.0
  %283 = vmatprep.subr.mxu0 0.0
  %284 = vmatpush1.msra.mxu0 0.0
  %285 = vmatprep.subr.mxu0 0.0
  %286 = vmatpush1.msra.mxu0 0.0
  %287 = vmatprep.subr.mxu0 0.0
  %288 = vmatpush1.msra.mxu0 0.0
  %289 = vmatprep.subr.mxu0 0.0
  %290 = vmatpush1.msra.mxu0 0.0
  %291 = vmatprep.subr.mxu0 0.0
  %292 = vmatpush1.msra.mxu0 0.0
  %293 = vmatprep.subr.mxu0 0.0
  %294 = vmatpush1.msra.mxu0 0.0
  %295 = vmatprep.subr.mxu0 0.0
  %296 = vmatpush1.msra.mxu0 0.0
  %297 = vmatprep.subr.mxu0 0.0
  %298 = vmatpush1.msra.mxu0 0.0
  %299 = vmatprep.subr.mxu0 0.0
  %300 = vmatpush1.msra.mxu0 0.0
  %301 = vmatprep.subr.mxu0 0.0
  %302 = vmatpush1.msra.mxu0 0.0
  %303 = vmatprep.subr.mxu0 0.0
  %304 = vmatpush1.msra.mxu0 0.0
  %305 = vmatprep.subr.mxu0 0.0
  %306 = vmatpush1.msra.mxu0 0.0
  %307 = vmatprep.subr.mxu0 0.0
  %308 = vmatpush1.msra.mxu0 0.0
  %309 = vmatprep.subr.mxu0 0.0
  %310 = vmatpush1.msra.mxu0 0.0
  %311 = vmatprep.subr.mxu0 0.0
  %312 = vmatpush1.msra.mxu0 0.0
  %313 = vmatprep.subr.mxu0 0.0
  %314 = vmatpush1.msra.mxu0 0.0
  %315 = vmatprep.subr.mxu0 0.0
  %316 = vmatpush1.msra.mxu0 0.0
  %317 = vmatprep.subr.mxu0 0.0
  %318 = vmatpush1.msra.mxu0 0.0
  %319 = vmatprep.subr.mxu0 0.0
  %320 = vmatpush1.msra.mxu0 0.0
  %321 = vmatprep.subr.mxu0 0.0
  %322 = vmatpush1.msra.mxu0 0.0
  %323 = vmatprep.subr.mxu0 0.0
  %324 = vmatpush1.msra.mxu0 0.0
  %325 = vmatprep.subr.mxu0 0.0
  %326 = vmatpush1.msra.mxu0 0.0
  %327 = vmatprep.mubr.f32.mxu0 0.0
  %328 = vmatmul.mubr.f32.gmra.mrb[0].mxu0 %v261
  %v329 = vpop.f32.mrb[0].mxu0
  %v330 = vadd.f32 0.0, %v329
  %v331 = vpop.f32.mrb[0].mxu0
  %332 = vdwg.mxu0
  %v333 = vadd.f32 %v257, %v330
  %v334 = vtanh.pop %v333
  %v335 = vxor.u32 %v333, 2147483648
  %v336 = vmul.f32 %v335, 1.442695
  %v337 = vpow.pop %v336
  %v338 = vadd.f32 %v337, 1.0
  %v339 = vrcp.pop %v338
  %v340 = vmul.f32 1.0, %v339
  %v341 = vsel %vm43, %v334, %v340
  %v342 = vmul.f32 %v341, %v161
  %344 = vrot.lane.b32.xlu0 %v341, 64
  %v345 = vpop.permute.xlu0 %344
  %v347 = vmul.f32 %v341, %v345
  %349 = vrot.lane.b32.xlu0 %v347, 32
  %v350 = vpop.permute.xlu0 %349
  %v352 = vadd.f32 %v342, %v350
  %v353 = vtanh.pop %v352
  %355 = vrot.lane.b32.xlu0 %v353, 64
  %v356 = vpop.permute.xlu0 %355
  %v358 = vmul.f32 %v341, %v356
  %vm359 = vcmp.gt.s32.totalorder %v29, 1
  %v360 = vsel %vm359, 1, 0
  %361 = vset.pattern.permute.xlu0 0
  %362 = vperm.xlu0 %361, %v360
  %v363 = vpop.permute.xlu0 %362
  %vm364 = vcmp.eq.s32.totalorder %v363, 1
  %v365 = vsel %vm364, %v358, %v160
  %v366 = vsel %vm364, %v352, %v161
  %v367 = vsel %vm364, %v358, 0.0
  %369 = vrot.lane.b32.xlu0 %v367, 32
  %v370 = vpop.permute.xlu0 %369
  %v371 = vsel %vm47, %v370, 0
  %373 = vmatprep.subr.mxu0 0.0
  %374 = vmatpush1.msra.mxu0 %v34
  %375 = vmatprep.subr.mxu0 0.0
  %376 = vmatpush1.msra.mxu0 %v35
  %377 = vmatprep.subr.mxu0 0.0
  %378 = vmatpush1.msra.mxu0 %v36
  %379 = vmatprep.subr.mxu0 0.0
  %380 = vmatpush1.msra.mxu0 %v37
  %381 = vmatprep.subr.mxu0 0.0
  %382 = vmatpush1.msra.mxu0 0.0
  %383 = vmatprep.subr.mxu0 0.0
  %384 = vmatpush1.msra.mxu0 0.0
  %385 = vmatprep.subr.mxu0 0.0
  %386 = vmatpush1.msra.mxu0 0.0
  %387 = vmatprep.subr.mxu0 0.0
  %388 = vmatpush1.msra.mxu0 0.0
  %389 = vmatprep.subr.mxu0 0.0
  %390 = vmatpush1.msra.mxu0 0.0
  %391 = vmatprep.subr.mxu0 0.0
  %392 = vmatpush1.msra.mxu0 0.0
  %393 = vmatprep.subr.mxu0 0.0
  %394 = vmatpush1.msra.mxu0 0.0
  %395 = vmatprep.subr.mxu0 0.0
  %396 = vmatpush1.msra.mxu0 0.0
  %397 = vmatprep.subr.mxu0 0.0
  %398 = vmatpush1.msra.mxu0 0.0
  %399 = vmatprep.subr.mxu0 0.0
  %400 = vmatpush1.msra.mxu0 0.0
  %401 = vmatprep.subr.mxu0 0.0
  %402 = vmatpush1.msra.mxu0 0.0
  %403 = vmatprep.subr.mxu0 0.0
  %404 = vmatpush1.msra.mxu0 0.0
  %405 = vmatprep.subr.mxu0 0.0
  %406 = vmatpush1.msra.mxu0 0.0
  %407 = vmatprep.subr.mxu0 0.0
  %408 = vmatpush1.msra.mxu0 0.0
  %409 = vmatprep.subr.mxu0 0.0
  %410 = vmatpush1.msra.mxu0 0.0
  %411 = vmatprep.subr.mxu0 0.0
  %412 = vmatpush1.msra.mxu0 0.0
  %413 = vmatprep.subr.mxu0 0.0
  %414 = vmatpush1.msra.mxu0 0.0
  %415 = vmatprep.subr.mxu0 0.0
  %416 = vmatpush1.msra.mxu0 0.0
  %417 = vmatprep.subr.mxu0 0.0
  %418 = vmatpush1.msra.mxu0 0.0
  %419 = vmatprep.subr.mxu0 0.0
  %420 = vmatpush1.msra.mxu0 0.0
  %421 = vmatprep.subr.mxu0 0.0
  %422 = vmatpush1.msra.mxu0 0.0
  %423 = vmatprep.subr.mxu0 0.0
  %424 = vmatpush1.msra.mxu0 0.0
  %425 = vmatprep.subr.mxu0 0.0
  %426 = vmatpush1.msra.mxu0 0.0
  %427 = vmatprep.subr.mxu0 0.0
  %428 = vmatpush1.msra.mxu0 0.0
  %429 = vmatprep.subr.mxu0 0.0
  %430 = vmatpush1.msra.mxu0 0.0
  %431 = vmatprep.subr.mxu0 0.0
  %432 = vmatpush1.msra.mxu0 0.0
  %433 = vmatprep.subr.mxu0 0.0
  %434 = vmatpush1.msra.mxu0 0.0
  %435 = vmatprep.subr.mxu0 0.0
  %436 = vmatpush1.msra.mxu0 0.0
  %437 = vmatprep.mubr.f32.mxu0 0.0
  %438 = vmatmul.mubr.f32.gmra.mrb[0].mxu0 %v371
  %v439 = vpop.f32.mrb[0].mxu0
  %v440 = vadd.f32 %v167, %v439
  %v441 = vpop.f32.mrb[0].mxu0
  %442 = vdwg.mxu0
  %443 = vmax.xlane.f32.xlu0 %v440
  %v444 = vpop.xlane.xlu0 %443
  %v445 = vsub.f32 %v440, %v444
  %v446 = vmul.f32 %v445, 1.442695
  %v447 = vpow.pop %v446
  %448 = vadd.xlane.f32.xlu0 %v447
  %v449 = vpop.xlane.xlu0 %448
  %v450 = vlog2.pop %v449
  %v451 = vmul.f32 %v450, 0.6931472
  %v452 = vadd.f32 %v444, %v451
  %v453 = vsub.f32 %v440, %v452
  %s454 = scalar_lea.vmem %s7, 8
  %455 = vst [vmem:[%s454] sm:$0xff] %v453
  %s456 = scalar_lea.vmem %s1, 16
  %v457 = vld [vmem:[%s456] sm:$0xff]
  %459 = vrot.lane.b32.xlu0 %v365, 32
  %v460 = vpop.permute.xlu0 %459
  %v461 = vsel %vm47, %v460, 0
  %463 = vmatprep.subr.mxu0 0.0
  %464 = vmatpush1.msra.mxu0 %v30
  %465 = vmatprep.subr.mxu0 0.0
  %466 = vmatpush1.msra.mxu0 %v31
  %467 = vmatprep.subr.mxu0 0.0
  %468 = vmatpush1.msra.mxu0 %v32
  %469 = vmatprep.subr.mxu0 0.0
  %470 = vmatpush1.msra.mxu0 %v33
  %471 = vmatprep.subr.mxu0 0.0
  %472 = vmatpush1.msra.mxu0 0.0
  %473 = vmatprep.subr.mxu0 0.0
  %474 = vmatpush1.msra.mxu0 0.0
  %475 = vmatprep.subr.mxu0 0.0
  %476 = vmatpush1.msra.mxu0 0.0
  %477 = vmatprep.subr.mxu0 0.0
  %478 = vmatpush1.msra.mxu0 0.0
  %479 = vmatprep.subr.mxu0 0.0
  %480 = vmatpush1.msra.mxu0 0.0
  %481 = vmatprep.subr.mxu0 0.0
  %482 = vmatpush1.msra.mxu0 0.0
  %483 = vmatprep.subr.mxu0 0.0
  %484 = vmatpush1.msra.mxu0 0.0
  %485 = vmatprep.subr.mxu0 0.0
  %486 = vmatpush1.msra.mxu0 0.0
  %487 = vmatprep.subr.mxu0 0.0
  %488 = vmatpush1.msra.mxu0 0.0
  %489 = vmatprep.subr.mxu0 0.0
  %490 = vmatpush1.msra.mxu0 0.0
  %491 = vmatprep.subr.mxu0 0.0
  %492 = vmatpush1.msra.mxu0 0.0
  %493 = vmatprep.subr.mxu0 0.0
  %494 = vmatpush1.msra.mxu0 0.0
  %495 = vmatprep.subr.mxu0 0.0
  %496 = vmatpush1.msra.mxu0 0.0
  %497 = vmatprep.subr.mxu0 0.0
  %498 = vmatpush1.msra.mxu0 0.0
  %499 = vmatprep.subr.mxu0 0.0
  %500 = vmatpush1.msra.mxu0 0.0
  %501 = vmatprep.subr.mxu0 0.0
  %502 = vmatpush1.msra.mxu0 0.0
  %503 = vmatprep.subr.mxu0 0.0
  %504 = vmatpush1.msra.mxu0 0.0
  %505 = vmatprep.subr.mxu0 0.0
  %506 = vmatpush1.msra.mxu0 0.0
  %507 = vmatprep.subr.mxu0 0.0
  %508 = vmatpush1.msra.mxu0 0.0
  %509 = vmatprep.subr.mxu0 0.0
  %510 = vmatpush1.msra.mxu0 0.0
  %511 = vmatprep.subr.mxu0 0.0
  %512 = vmatpush1.msra.mxu0 0.0
  %513 = vmatprep.subr.mxu0 0.0
  %514 = vmatpush1.msra.mxu0 0.0
  %515 = vmatprep.subr.mxu0 0.0
  %516 = vmatpush1.msra.mxu0 0.0
  %517 = vmatprep.subr.mxu0 0.0
  %518 = vmatpush1.msra.mxu0 0.0
  %519 = vmatprep.subr.mxu0 0.0
  %520 = vmatpush1.msra.mxu0 0.0
  %521 = vmatprep.subr.mxu0 0.0
  %522 = vmatpush1.msra.mxu0 0.0
  %523 = vmatprep.subr.mxu0 0.0
  %524 = vmatpush1.msra.mxu0 0.0
  %525 = vmatprep.subr.mxu0 0.0
  %526 = vmatpush1.msra.mxu0 0.0
  %527 = vmatprep.mubr.f32.mxu0 0.0
  %528 = vmatmul.mubr.f32.gmra.mrb[0].mxu0 %v461
  %v529 = vpop.f32.mrb[0].mxu0
  %v530 = vadd.f32 0.0, %v529
  %v531 = vpop.f32.mrb[0].mxu0
  %532 = vdwg.mxu0
  %v533 = vadd.f32 %v457, %v530
  %v534 = vtanh.pop %v533
  %v535 = vxor.u32 %v533, 2147483648
  %v536 = vmul.f32 %v535, 1.442695
  %v537 = vpow.pop %v536
  %v538 = vadd.f32 %v537, 1.0
  %v539 = vrcp.pop %v538
  %v540 = vmul.f32 1.0, %v539
  %v541 = vsel %vm43, %v534, %v540
  %v542 = vmul.f32 %v541, %v366
  %544 = vrot.lane.b32.xlu0 %v541, 64
  %v545 = vpop.permute.xlu0 %544
  %v547 = vmul.f32 %v541, %v545
  %549 = vrot.lane.b32.xlu0 %v547, 32
  %v550 = vpop.permute.xlu0 %549
  %v552 = vadd.f32 %v542, %v550
  %v553 = vtanh.pop %v552
  %555 = vrot.lane.b32.xlu0 %v553, 64
  %v556 = vpop.permute.xlu0 %555
  %v558 = vmul.f32 %v541, %v556
  %vm559 = vcmp.gt.s32.totalorder %v29, 2
  %v560 = vsel %vm559, 1, 0
  %561 = vset.pattern.permute.xlu0 0
  %562 = vperm.xlu0 %561, %v560
  %v563 = vpop.permute.xlu0 %562
  %vm564 = vcmp.eq.s32.totalorder %v563, 1
  %v565 = vsel %vm564, %v558, %v365
  %v566 = vsel %vm564, %v552, %v366
  %v567 = vsel %vm564, %v558, 0.0
  %569 = vrot.lane.b32.xlu0 %v567, 32
  %v570 = vpop.permute.xlu0 %569
  %v571 = vsel %vm47, %v570, 0
  %573 = vmatprep.subr.mxu0 0.0
  %574 = vmatpush1.msra.mxu0 %v34
  %575 = vmatprep.subr.mxu0 0.0
  %576 = vmatpush1.msra.mxu0 %v35
  %577 = vmatprep.subr.mxu0 0.0
  %578 = vmatpush1.msra.mxu0 %v36
  %579 = vmatprep.subr.mxu0 0.0
  %580 = vmatpush1.msra.mxu0 %v37
  %581 = vmatprep.subr.mxu0 0.0
  %582 = vmatpush1.msra.mxu0 0.0
  %583 = vmatprep.subr.mxu0 0.0
  %584 = vmatpush1.msra.mxu0 0.0
  %585 = vmatprep.subr.mxu0 0.0
  %586 = vmatpush1.msra.mxu0 0.0
  %587 = vmatprep.subr.mxu0 0.0
  %588 = vmatpush1.msra.mxu0 0.0
  %589 = vmatprep.subr.mxu0 0.0
  %590 = vmatpush1.msra.mxu0 0.0
  %591 = vmatprep.subr.mxu0 0.0
  %592 = vmatpush1.msra.mxu0 0.0
  %593 = vmatprep.subr.mxu0 0.0
  %594 = vmatpush1.msra.mxu0 0.0
  %595 = vmatprep.subr.mxu0 0.0
  %596 = vmatpush1.msra.mxu0 0.0
  %597 = vmatprep.subr.mxu0 0.0
  %598 = vmatpush1.msra.mxu0 0.0
  %599 = vmatprep.subr.mxu0 0.0
  %600 = vmatpush1.msra.mxu0 0.0
  %601 = vmatprep.subr.mxu0 0.0
  %602 = vmatpush1.msra.mxu0 0.0
  %603 = vmatprep.subr.mxu0 0.0
  %604 = vmatpush1.msra.mxu0 0.0
  %605 = vmatprep.subr.mxu0 0.0
  %606 = vmatpush1.msra.mxu0 0.0
  %607 = vmatprep.subr.mxu0 0.0
  %608 = vmatpush1.msra.mxu0 0.0
  %609 = vmatprep.subr.mxu0 0.0
  %610 = vmatpush1.msra.mxu0 0.0
  %611 = vmatprep.subr.mxu0 0.0
  %612 = vmatpush1.msra.mxu0 0.0
  %613 = vmatprep.subr.mxu0 0.0
  %614 = vmatpush1.msra.mxu0 0.0
  %615 = vmatprep.subr.mxu0 0.0
  %616 = vmatpush1.msra.mxu0 0.0
  %617 = vmatprep.subr.mxu0 0.0
  %618 = vmatpush1.msra.mxu0 0.0
  %619 = vmatprep.subr.mxu0 0.0
  %620 = vmatpush1.msra.mxu0 0.0
  %621 = vmatprep.subr.mxu0 0.0
  %622 = vmatpush1.msra.mxu0 0.0
  %623 = vmatprep.subr.mxu0 0.0
  %624 = vmatpush1.msra.mxu0 0.0
  %625 = vmatprep.subr.mxu0 0.0
  %626 = vmatpush1.msra.mxu0 0.0
  %627 = vmatprep.subr.mxu0 0.0
  %628 = vmatpush1.msra.mxu0 0.0
  %629 = vmatprep.subr.mxu0 0.0
  %630 = vmatpush1.msra.mxu0 0.0
  %631 = vmatprep.subr.mxu0 0.0
  %632 = vmatpush1.msra.mxu0 0.0
  %633 = vmatprep.subr.mxu0 0.0
  %634 = vmatpush1.msra.mxu0 0.0
  %635 = vmatprep.subr.mxu0 0.0
  %636 = vmatpush1.msra.mxu0 0.0
  %637 = vmatprep.mubr.f32.mxu0 0.0
  %638 = vmatmul.mubr.f32.gmra.mrb[0].mxu0 %v571
  %v639 = vpop.f32.mrb[0].mxu0
  %v640 = vadd.f32 %v167, %v639
  %v641 = vpop.f32.mrb[0].mxu0
  %642 = vdwg.mxu0
  %643 = vmax.xlane.f32.xlu0 %v640
  %v644 = vpop.xlane.xlu0 %643
  %v645 = vsub.f32 %v640, %v644
  %v646 = vmul.f32 %v645, 1.442695
  %v647 = vpow.pop %v646
  %648 = vadd.xlane.f32.xlu0 %v647
  %v649 = vpop.xlane.xlu0 %648
  %v650 = vlog2.pop %v649
  %v651 = vmul.f32 %v650, 0.6931472
  %v652 = vadd.f32 %v644, %v651
  %v653 = vsub.f32 %v640, %v652
  %s654 = scalar_lea.vmem %s7, 16
  %655 = vst [vmem:[%s654] sm:$0xff] %v653
  %s656 = scalar_lea.vmem %s1, 24
  %v657 = vld [vmem:[%s656] sm:$0xff]
  %659 = vrot.lane.b32.xlu0 %v565, 32
  %v660 = vpop.permute.xlu0 %659
  %v661 = vsel %vm47, %v660, 0
  %663 = vmatprep.subr.mxu0 0.0
  %664 = vmatpush1.msra.mxu0 %v30
  %665 = vmatprep.subr.mxu0 0.0
  %666 = vmatpush1.msra.mxu0 %v31
  %667 = vmatprep.subr.mxu0 0.0
  %668 = vmatpush1.msra.mxu0 %v32
  %669 = vmatprep.subr.mxu0 0.0
  %670 = vmatpush1.msra.mxu0 %v33
  %671 = vmatprep.subr.mxu0 0.0
  %672 = vmatpush1.msra.mxu0 0.0
  %673 = vmatprep.subr.mxu0 0.0
  %674 = vmatpush1.msra.mxu0 0.0
  %675 = vmatprep.subr.mxu0 0.0
  %676 = vmatpush1.msra.mxu0 0.0
  %677 = vmatprep.subr.mxu0 0.0
  %678 = vmatpush1.msra.mxu0 0.0
  %679 = vmatprep.subr.mxu0 0.0
  %680 = vmatpush1.msra.mxu0 0.0
  %681 = vmatprep.subr.mxu0 0.0
  %682 = vmatpush1.msra.mxu0 0.0
  %683 = vmatprep.subr.mxu0 0.0
  %684 = vmatpush1.msra.mxu0 0.0
  %685 = vmatprep.subr.mxu0 0.0
  %686 = vmatpush1.msra.mxu0 0.0
  %687 = vmatprep.subr.mxu0 0.0
  %688 = vmatpush1.msra.mxu0 0.0
  %689 = vmatprep.subr.mxu0 0.0
  %690 = vmatpush1.msra.mxu0 0.0
  %691 = vmatprep.subr.mxu0 0.0
  %692 = vmatpush1.msra.mxu0 0.0
  %693 = vmatprep.subr.mxu0 0.0
  %694 = vmatpush1.msra.mxu0 0.0
  %695 = vmatprep.subr.mxu0 0.0
  %696 = vmatpush1.msra.mxu0 0.0
  %697 = vmatprep.subr.mxu0 0.0
  %698 = vmatpush1.msra.mxu0 0.0
  %699 = vmatprep.subr.mxu0 0.0
  %700 = vmatpush1.msra.mxu0 0.0
  %701 = vmatprep.subr.mxu0 0.0
  %702 = vmatpush1.msra.mxu0 0.0
  %703 = vmatprep.subr.mxu0 0.0
  %704 = vmatpush1.msra.mxu0 0.0
  %705 = vmatprep.subr.mxu0 0.0
  %706 = vmatpush1.msra.mxu0 0.0
  %707 = vmatprep.subr.mxu0 0.0
  %708 = vmatpush1.msra.mxu0 0.0
  %709 = vmatprep.subr.mxu0 0.0
  %710 = vmatpush1.msra.mxu0 0.0
  %711 = vmatprep.subr.mxu0 0.0
  %712 = vmatpush1.msra.mxu0 0.0
  %713 = vmatprep.subr.mxu0 0.0
  %714 = vmatpush1.msra.mxu0 0.0
  %715 = vmatprep.subr.mxu0 0.0
  %716 = vmatpush1.msra.mxu0 0.0
  %717 = vmatprep.subr.mxu0 0.0
  %718 = vmatpush1.msra.mxu0 0.0
  %719 = vmatprep.subr.mxu0 0.0
  %720 = vmatpush1.msra.mxu0 0.0
  %721 = vmatprep.subr.mxu0 0.0
  %722 = vmatpush1.msra.mxu0 0.0
  %723 = vmatprep.subr.mxu0 0.0
  %724 = vmatpush1.msra.mxu0 0.0
  %725 = vmatprep.subr.mxu0 0.0
  %726 = vmatpush1.msra.mxu0 0.0
  %727 = vmatprep.mubr.f32.mxu0 0.0
  %728 = vmatmul.mubr.f32.gmra.mrb[0].mxu0 %v661
  %v729 = vpop.f32.mrb[0].mxu0
  %v730 = vadd.f32 0.0, %v729
  %v731 = vpop.f32.mrb[0].mxu0
  %732 = vdwg.mxu0
  %v733 = vadd.f32 %v657, %v730
  %v734 = vtanh.pop %v733
  %v735 = vxor.u32 %v733, 2147483648
  %v736 = vmul.f32 %v735, 1.442695
  %v737 = vpow.pop %v736
  %v738 = vadd.f32 %v737, 1.0
  %v739 = vrcp.pop %v738
  %v740 = vmul.f32 1.0, %v739
  %v741 = vsel %vm43, %v734, %v740
  %v742 = vmul.f32 %v741, %v566
  %744 = vrot.lane.b32.xlu0 %v741, 64
  %v745 = vpop.permute.xlu0 %744
  %v747 = vmul.f32 %v741, %v745
  %749 = vrot.lane.b32.xlu0 %v747, 32
  %v750 = vpop.permute.xlu0 %749
  %v752 = vadd.f32 %v742, %v750
  %v753 = vtanh.pop %v752
  %755 = vrot.lane.b32.xlu0 %v753, 64
  %v756 = vpop.permute.xlu0 %755
  %v758 = vmul.f32 %v741, %v756
  %vm759 = vcmp.gt.s32.totalorder %v29, 3
  %v760 = vsel %vm759, 1, 0
  %761 = vset.pattern.permute.xlu0 0
  %762 = vperm.xlu0 %761, %v760
  %v763 = vpop.permute.xlu0 %762
  %vm764 = vcmp.eq.s32.totalorder %v763, 1
  %v765 = vsel %vm764, %v758, %v565
  %v766 = vsel %vm764, %v752, %v566
  %v767 = vsel %vm764, %v758, 0.0
  %769 = vrot.lane.b32.xlu0 %v767, 32
  %v770 = vpop.permute.xlu0 %769
  %v771 = vsel %vm47, %v770, 0
  %773 = vmatprep.subr.mxu0 0.0
  %774 = vmatpush1.msra.mxu0 %v34
  %775 = vmatprep.subr.mxu0 0.0
  %776 = vmatpush1.msra.mxu0 %v35
  %777 = vmatprep.subr.mxu0 0.0
  %778 = vmatpush1.msra.mxu0 %v36
  %779 = vmatprep.subr.mxu0 0.0
  %780 = vmatpush1.msra.mxu0 %v37
  %781 = vmatprep.subr.mxu0 0.0
  %782 = vmatpush1.msra.mxu0 0.0
  %783 = vmatprep.subr.mxu0 0.0
  %784 = vmatpush1.msra.mxu0 0.0
  %785 = vmatprep.subr.mxu0 0.0
  %786 = vmatpush1.msra.mxu0 0.0
  %787 = vmatprep.subr.mxu0 0.0
  %788 = vmatpush1.msra.mxu0 0.0
  %789 = vmatprep.subr.mxu0 0.0
  %790 = vmatpush1.msra.mxu0 0.0
  %791 = vmatprep.subr.mxu0 0.0
  %792 = vmatpush1.msra.mxu0 0.0
  %793 = vmatprep.subr.mxu0 0.0
  %794 = vmatpush1.msra.mxu0 0.0
  %795 = vmatprep.subr.mxu0 0.0
  %796 = vmatpush1.msra.mxu0 0.0
  %797 = vmatprep.subr.mxu0 0.0
  %798 = vmatpush1.msra.mxu0 0.0
  %799 = vmatprep.subr.mxu0 0.0
  %800 = vmatpush1.msra.mxu0 0.0
  %801 = vmatprep.subr.mxu0 0.0
  %802 = vmatpush1.msra.mxu0 0.0
  %803 = vmatprep.subr.mxu0 0.0
  %804 = vmatpush1.msra.mxu0 0.0
  %805 = vmatprep.subr.mxu0 0.0
  %806 = vmatpush1.msra.mxu0 0.0
  %807 = vmatprep.subr.mxu0 0.0
  %808 = vmatpush1.msra.mxu0 0.0
  %809 = vmatprep.subr.mxu0 0.0
  %810 = vmatpush1.msra.mxu0 0.0
  %811 = vmatprep.subr.mxu0 0.0
  %812 = vmatpush1.msra.mxu0 0.0
  %813 = vmatprep.subr.mxu0 0.0
  %814 = vmatpush1.msra.mxu0 0.0
  %815 = vmatprep.subr.mxu0 0.0
  %816 = vmatpush1.msra.mxu0 0.0
  %817 = vmatprep.subr.mxu0 0.0
  %818 = vmatpush1.msra.mxu0 0.0
  %819 = vmatprep.subr.mxu0 0.0
  %820 = vmatpush1.msra.mxu0 0.0
  %821 = vmatprep.subr.mxu0 0.0
  %822 = vmatpush1.msra.mxu0 0.0
  %823 = vmatprep.subr.mxu0 0.0
  %824 = vmatpush1.msra.mxu0 0.0
  %825 = vmatprep.subr.mxu0 0.0
  %826 = vmatpush1.msra.mxu0 0.0
  %827 = vmatprep.subr.mxu0 0.0
  %828 = vmatpush1.msra.mxu0 0.0
  %829 = vmatprep.subr.mxu0 0.0
  %830 = vmatpush1.msra.mxu0 0.0
  %831 = vmatprep.subr.mxu0 0.0
  %832 = vmatpush1.msra.mxu0 0.0
  %833 = vmatprep.subr.mxu0 0.0
  %834 = vmatpush1.msra.mxu0 0.0
  %835 = vmatprep.subr.mxu0 0.0
  %836 = vmatpush1.msra.mxu0 0.0
  %837 = vmatprep.mubr.f32.mxu0 0.0
  %838 = vmatmul.mubr.f32.gmra.mrb[0].mxu0 %v771
  %v839 = vpop.f32.mrb[0].mxu0
  %v840 = vadd.f32 %v167, %v839
  %v841 = vpop.f32.mrb[0].mxu0
  %842 = vdwg.mxu0
  %843 = vmax.xlane.f32.xlu0 %v840
  %v844 = vpop.xlane.xlu0 %843
  %v845 = vsub.f32 %v840, %v844
  %v846 = vmul.f32 %v845, 1.442695
  %v847 = vpow.pop %v846
  %848 = vadd.xlane.f32.xlu0 %v847
  %v849 = vpop.xlane.xlu0 %848
  %v850 = vlog2.pop %v849
  %v851 = vmul.f32 %v850, 0.6931472
  %v852 = vadd.f32 %v844, %v851
  %v853 = vsub.f32 %v840, %v852
  %s854 = scalar_lea.vmem %s7, 24
  %855 = vst [vmem:[%s854] sm:$0xff] %v853
  %s856 = scalar_lea.vmem %s1, 32
  %v857 = vld [vmem:[%s856] sm:$0xff]
  %859 = vrot.lane.b32.xlu0 %v765, 32
  %v860 = vpop.permute.xlu0 %859
  %v861 = vsel %vm47, %v860, 0
  %863 = vmatprep.subr.mxu0 0.0
  %864 = vmatpush1.msra.mxu0 %v30
  %865 = vmatprep.subr.mxu0 0.0
  %866 = vmatpush1.msra.mxu0 %v31
  %867 = vmatprep.subr.mxu0 0.0
  %868 = vmatpush1.msra.mxu0 %v32
  %869 = vmatprep.subr.mxu0 0.0
  %870 = vmatpush1.msra.mxu0 %v33
  %871 = vmatprep.subr.mxu0 0.0
  %872 = vmatpush1.msra.mxu0 0.0
  %873 = vmatprep.subr.mxu0 0.0
  %874 = vmatpush1.msra.mxu0 0.0
  %875 = vmatprep.subr.mxu0 0.0
  %876 = vmatpush1.msra.mxu0 0.0
  %877 = vmatprep.subr.mxu0 0.0
  %878 = vmatpush1.msra.mxu0 0.0
  %879 = vmatprep.subr.mxu0 0.0
  %880 = vmatpush1.msra.mxu0 0.0
  %881 = vmatprep.subr.mxu0 0.0
  %882 = vmatpush1.msra.mxu0 0.0
  %883 = vmatprep.subr.mxu0 0.0
  %884 = vmatpush1.msra.mxu0 0.0
  %885 = vmatprep.subr.mxu0 0.0
  %886 = vmatpush1.msra.mxu0 0.0
  %887 = vmatprep.subr.mxu0 0.0
  %888 = vmatpush1.msra.mxu0 0.0
  %889 = vmatprep.subr.mxu0 0.0
  %890 = vmatpush1.msra.mxu0 0.0
  %891 = vmatprep.subr.mxu0 0.0
  %892 = vmatpush1.msra.mxu0 0.0
  %893 = vmatprep.subr.mxu0 0.0
  %894 = vmatpush1.msra.mxu0 0.0
  %895 = vmatprep.subr.mxu0 0.0
  %896 = vmatpush1.msra.mxu0 0.0
  %897 = vmatprep.subr.mxu0 0.0
  %898 = vmatpush1.msra.mxu0 0.0
  %899 = vmatprep.subr.mxu0 0.0
  %900 = vmatpush1.msra.mxu0 0.0
  %901 = vmatprep.subr.mxu0 0.0
  %902 = vmatpush1.msra.mxu0 0.0
  %903 = vmatprep.subr.mxu0 0.0
  %904 = vmatpush1.msra.mxu0 0.0
  %905 = vmatprep.subr.mxu0 0.0
  %906 = vmatpush1.msra.mxu0 0.0
  %907 = vmatprep.subr.mxu0 0.0
  %908 = vmatpush1.msra.mxu0 0.0
  %909 = vmatprep.subr.mxu0 0.0
  %910 = vmatpush1.msra.mxu0 0.0
  %911 = vmatprep.subr.mxu0 0.0
  %912 = vmatpush1.msra.mxu0 0.0
  %913 = vmatprep.subr.mxu0 0.0
  %914 = vmatpush1.msra.mxu0 0.0
  %915 = vmatprep.subr.mxu0 0.0
  %916 = vmatpush1.msra.mxu0 0.0
  %917 = vmatprep.subr.mxu0 0.0
  %918 = vmatpush1.msra.mxu0 0.0
  %919 = vmatprep.subr.mxu0 0.0
  %920 = vmatpush1.msra.mxu0 0.0
  %921 = vmatprep.subr.mxu0 0.0
  %922 = vmatpush1.msra.mxu0 0.0
  %923 = vmatprep.subr.mxu0 0.0
  %924 = vmatpush1.msra.mxu0 0.0
  %925 = vmatprep.subr.mxu0 0.0
  %926 = vmatpush1.msra.mxu0 0.0
  %927 = vmatprep.mubr.f32.mxu0 0.0
  %928 = vmatmul.mubr.f32.gmra.mrb[0].mxu0 %v861
  %v929 = vpop.f32.mrb[0].mxu0
  %v930 = vadd.f32 0.0, %v929
  %v931 = vpop.f32.mrb[0].mxu0
  %932 = vdwg.mxu0
  %v933 = vadd.f32 %v857, %v930
  %v934 = vtanh.pop %v933
  %v935 = vxor.u32 %v933, 2147483648
  %v936 = vmul.f32 %v935, 1.442695
  %v937 = vpow.pop %v936
  %v938 = vadd.f32 %v937, 1.0
  %v939 = vrcp.pop %v938
  %v940 = vmul.f32 1.0, %v939
  %v941 = vsel %vm43, %v934, %v940
  %v942 = vmul.f32 %v941, %v766
  %944 = vrot.lane.b32.xlu0 %v941, 64
  %v945 = vpop.permute.xlu0 %944
  %v947 = vmul.f32 %v941, %v945
  %949 = vrot.lane.b32.xlu0 %v947, 32
  %v950 = vpop.permute.xlu0 %949
  %v952 = vadd.f32 %v942, %v950
  %v953 = vtanh.pop %v952
  %955 = vrot.lane.b32.xlu0 %v953, 64
  %v956 = vpop.permute.xlu0 %955
  %v958 = vmul.f32 %v941, %v956
  %vm959 = vcmp.gt.s32.totalorder %v29, 4
  %v960 = vsel %vm959, 1, 0
  %961 = vset.pattern.permute.xlu0 0
  %962 = vperm.xlu0 %961, %v960
  %v963 = vpop.permute.xlu0 %962
  %vm964 = vcmp.eq.s32.totalorder %v963, 1
  %v965 = vsel %vm964, %v958, %v765
  %v966 = vsel %vm964, %v952, %v766
  %v967 = vsel %vm964, %v958, 0.0
  %969 = vrot.lane.b32.xlu0 %v967, 32
  %v970 = vpop.permute.xlu0 %969
  %v971 = vsel %vm47, %v970, 0
  %973 = vmatprep.subr.mxu0 0.0
  %974 = vmatpush1.msra.mxu0 %v34
  %975 = vmatprep.subr.mxu0 0.0
  %976 = vmatpush1.msra.mxu0 %v35
  %977 = vmatprep.subr.mxu0 0.0
  %978 = vmatpush1.msra.mxu0 %v36
  %979 = vmatprep.subr.mxu0 0.0
  %980 = vmatpush1.msra.mxu0 %v37
  %981 = vmatprep.subr.mxu0 0.0
  %982 = vmatpush1.msra.mxu0 0.0
  %983 = vmatprep.subr.mxu0 0.0
  %984 = vmatpush1.msra.mxu0 0.0
  %985 = vmatprep.subr.mxu0 0.0
  %986 = vmatpush1.msra.mxu0 0.0
  %987 = vmatprep.subr.mxu0 0.0
  %988 = vmatpush1.msra.mxu0 0.0
  %989 = vmatprep.subr.mxu0 0.0
  %990 = vmatpush1.msra.mxu0 0.0
  %991 = vmatprep.subr.mxu0 0.0
  %992 = vmatpush1.msra.mxu0 0.0
  %993 = vmatprep.subr.mxu0 0.0
  %994 = vmatpush1.msra.mxu0 0.0
  %995 = vmatprep.subr.mxu0 0.0
  %996 = vmatpush1.msra.mxu0 0.0
  %997 = vmatprep.subr.mxu0 0.0
  %998 = vmatpush1.msra.mxu0 0.0
  %999 = vmatprep.subr.mxu0 0.0
  %1000 = vmatpush1.msra.mxu0 0.0
  %1001 = vmatprep.subr.mxu0 0.0
  %1002 = vmatpush1.msra.mxu0 0.0
  %1003 = vmatprep.subr.mxu0 0.0
  %1004 = vmatpush1.msra.mxu0 0.0
  %1005 = vmatprep.subr.mxu0 0.0
  %1006 = vmatpush1.msra.mxu0 0.0
  %1007 = vmatprep.subr.mxu0 0.0
  %1008 = vmatpush1.msra.mxu0 0.0
  %1009 = vmatprep.subr.mxu0 0.0
  %1010 = vmatpush1.msra.mxu0 0.0
  %1011 = vmatprep.subr.mxu0 0.0
  %1012 = vmatpush1.msra.mxu0 0.0
  %1013 = vmatprep.subr.mxu0 0.0
  %1014 = vmatpush1.msra.mxu0 0.0
  %1015 = vmatprep.subr.mxu0 0.0
  %1016 = vmatpush1.msra.mxu0 0.0
  %1017 = vmatprep.subr.mxu0 0.0
  %1018 = vmatpush1.msra.mxu0 0.0
  %1019 = vmatprep.subr.mxu0 0.0
  %1020 = vmatpush1.msra.mxu0 0.0
  %1021 = vmatprep.subr.mxu0 0.0
  %1022 = vmatpush1.msra.mxu0 0.0
  %1023 = vmatprep.subr.mxu0 0.0
  %1024 = vmatpush1.msra.mxu0 0.0
  %1025 = vmatprep.subr.mxu0 0.0
  %1026 = vmatpush1.msra.mxu0 0.0
  %1027 = vmatprep.subr.mxu0 0.0
  %1028 = vmatpush1.msra.mxu0 0.0
  %1029 = vmatprep.subr.mxu0 0.0
  %1030 = vmatpush1.msra.mxu0 0.0
  %1031 = vmatprep.subr.mxu0 0.0
  %1032 = vmatpush1.msra.mxu0 0.0
  %1033 = vmatprep.subr.mxu0 0.0
  %1034 = vmatpush1.msra.mxu0 0.0
  %1035 = vmatprep.subr.mxu0 0.0
  %1036 = vmatpush1.msra.mxu0 0.0
  %1037 = vmatprep.mubr.f32.mxu0 0.0
  %1038 = vmatmul.mubr.f32.gmra.mrb[0].mxu0 %v971
  %v1039 = vpop.f32.mrb[0].mxu0
  %v1040 = vadd.f32 %v167, %v1039
  %v1041 = vpop.f32.mrb[0].mxu0
  %1042 = vdwg.mxu0
  %1043 = vmax.xlane.f32.xlu0 %v1040
  %v1044 = vpop.xlane.xlu0 %1043
  %v1045 = vsub.f32 %v1040, %v1044
  %v1046 = vmul.f32 %v1045, 1.442695
  %v1047 = vpow.pop %v1046
  %1048 = vadd.xlane.f32.xlu0 %v1047
  %v1049 = vpop.xlane.xlu0 %1048
  %v1050 = vlog2.pop %v1049
  %v1051 = vmul.f32 %v1050, 0.6931472
  %v1052 = vadd.f32 %v1044, %v1051
  %v1053 = vsub.f32 %v1040, %v1052
  %s1054 = scalar_lea.vmem %s7, 32
  %1055 = vst [vmem:[%s1054] sm:$0xff] %v1053
  %s1056 = scalar_lea.vmem %s1, 40
  %v1057 = vld [vmem:[%s1056] sm:$0xff]
  %1059 = vrot.lane.b32.xlu0 %v965, 32
  %v1060 = vpop.permute.xlu0 %1059
  %v1061 = vsel %vm47, %v1060, 0
  %1063 = vmatprep.subr.mxu0 0.0
  %1064 = vmatpush1.msra.mxu0 %v30
  %1065 = vmatprep.subr.mxu0 0.0
  %1066 = vmatpush1.msra.mxu0 %v31
  %1067 = vmatprep.subr.mxu0 0.0
  %1068 = vmatpush1.msra.mxu0 %v32
  %1069 = vmatprep.subr.mxu0 0.0
  %1070 = vmatpush1.msra.mxu0 %v33
  %1071 = vmatprep.subr.mxu0 0.0
  %1072 = vmatpush1.msra.mxu0 0.0
  %1073 = vmatprep.subr.mxu0 0.0
  %1074 = vmatpush1.msra.mxu0 0.0
  %1075 = vmatprep.subr.mxu0 0.0
  %1076 = vmatpush1.msra.mxu0 0.0
  %1077 = vmatprep.subr.mxu0 0.0
  %1078 = vmatpush1.msra.mxu0 0.0
  %1079 = vmatprep.subr.mxu0 0.0
  %1080 = vmatpush1.msra.mxu0 0.0
  %1081 = vmatprep.subr.mxu0 0.0
  %1082 = vmatpush1.msra.mxu0 0.0
  %1083 = vmatprep.subr.mxu0 0.0
  %1084 = vmatpush1.msra.mxu0 0.0
  %1085 = vmatprep.subr.mxu0 0.0
  %1086 = vmatpush1.msra.mxu0 0.0
  %1087 = vmatprep.subr.mxu0 0.0
  %1088 = vmatpush1.msra.mxu0 0.0
  %1089 = vmatprep.subr.mxu0 0.0
  %1090 = vmatpush1.msra.mxu0 0.0
  %1091 = vmatprep.subr.mxu0 0.0
  %1092 = vmatpush1.msra.mxu0 0.0
  %1093 = vmatprep.subr.mxu0 0.0
  %1094 = vmatpush1.msra.mxu0 0.0
  %1095 = vmatprep.subr.mxu0 0.0
  %1096 = vmatpush1.msra.mxu0 0.0
  %1097 = vmatprep.subr.mxu0 0.0
  %1098 = vmatpush1.msra.mxu0 0.0
  %1099 = vmatprep.subr.mxu0 0.0
  %1100 = vmatpush1.msra.mxu0 0.0
  %1101 = vmatprep.subr.mxu0 0.0
  %1102 = vmatpush1.msra.mxu0 0.0
  %1103 = vmatprep.subr.mxu0 0.0
  %1104 = vmatpush1.msra.mxu0 0.0
  %1105 = vmatprep.subr.mxu0 0.0
  %1106 = vmatpush1.msra.mxu0 0.0
  %1107 = vmatprep.subr.mxu0 0.0
  %1108 = vmatpush1.msra.mxu0 0.0
  %1109 = vmatprep.subr.mxu0 0.0
  %1110 = vmatpush1.msra.mxu0 0.0
  %1111 = vmatprep.subr.mxu0 0.0
  %1112 = vmatpush1.msra.mxu0 0.0
  %1113 = vmatprep.subr.mxu0 0.0
  %1114 = vmatpush1.msra.mxu0 0.0
  %1115 = vmatprep.subr.mxu0 0.0
  %1116 = vmatpush1.msra.mxu0 0.0
  %1117 = vmatprep.subr.mxu0 0.0
  %1118 = vmatpush1.msra.mxu0 0.0
  %1119 = vmatprep.subr.mxu0 0.0
  %1120 = vmatpush1.msra.mxu0 0.0
  %1121 = vmatprep.subr.mxu0 0.0
  %1122 = vmatpush1.msra.mxu0 0.0
  %1123 = vmatprep.subr.mxu0 0.0
  %1124 = vmatpush1.msra.mxu0 0.0
  %1125 = vmatprep.subr.mxu0 0.0
  %1126 = vmatpush1.msra.mxu0 0.0
  %1127 = vmatprep.mubr.f32.mxu0 0.0
  %1128 = vmatmul.mubr.f32.gmra.mrb[0].mxu0 %v1061
  %v1129 = vpop.f32.mrb[0].mxu0
  %v1130 = vadd.f32 0.0, %v1129
  %v1131 = vpop.f32.mrb[0].mxu0
  %1132 = vdwg.mxu0
  %v1133 = vadd.f32 %v1057, %v1130
  %v1134 = vtanh.pop %v1133
  %v1135 = vxor.u32 %v1133, 2147483648
  %v1136 = vmul.f32 %v1135, 1.442695
  %v1137 = vpow.pop %v1136
  %v1138 = vadd.f32 %v1137, 1.0
  %v1139 = vrcp.pop %v1138
  %v1140 = vmul.f32 1.0, %v1139
  %v1141 = vsel %vm43, %v1134, %v1140
  %v1142 = vmul.f32 %v1141, %v966
  %1144 = vrot.lane.b32.xlu0 %v1141, 64
  %v1145 = vpop.permute.xlu0 %1144
  %v1147 = vmul.f32 %v1141, %v1145
  %1149 = vrot.lane.b32.xlu0 %v1147, 32
  %v1150 = vpop.permute.xlu0 %1149
  %v1152 = vadd.f32 %v1142, %v1150
  %v1153 = vtanh.pop %v1152
  %1155 = vrot.lane.b32.xlu0 %v1153, 64
  %v1156 = vpop.permute.xlu0 %1155
  %v1158 = vmul.f32 %v1141, %v1156
  %vm1159 = vcmp.gt.s32.totalorder %v29, 5
  %v1160 = vsel %vm1159, 1, 0
  %1161 = vset.pattern.permute.xlu0 0
  %1162 = vperm.xlu0 %1161, %v1160
  %v1163 = vpop.permute.xlu0 %1162
  %vm1164 = vcmp.eq.s32.totalorder %v1163, 1
  %v1165 = vsel %vm1164, %v1158, %v965
  %v1166 = vsel %vm1164, %v1152, %v966
  %v1167 = vsel %vm1164, %v1158, 0.0
  %1169 = vrot.lane.b32.xlu0 %v1167, 32
  %v1170 = vpop.permute.xlu0 %1169
  %v1171 = vsel %vm47, %v1170, 0
  %1173 = vmatprep.subr.mxu0 0.0
  %1174 = vmatpush1.msra.mxu0 %v34
  %1175 = vmatprep.subr.mxu0 0.0
  %1176 = vmatpush1.msra.mxu0 %v35
  %1177 = vmatprep.subr.mxu0 0.0
  %1178 = vmatpush1.msra.mxu0 %v36
  %1179 = vmatprep.subr.mxu0 0.0
  %1180 = vmatpush1.msra.mxu0 %v37
  %1181 = vmatprep.subr.mxu0 0.0
  %1182 = vmatpush1.msra.mxu0 0.0
  %1183 = vmatprep.subr.mxu0 0.0
  %1184 = vmatpush1.msra.mxu0 0.0
  %1185 = vmatprep.subr.mxu0 0.0
  %1186 = vmatpush1.msra.mxu0 0.0
  %1187 = vmatprep.subr.mxu0 0.0
  %1188 = vmatpush1.msra.mxu0 0.0
  %1189 = vmatprep.subr.mxu0 0.0
  %1190 = vmatpush1.msra.mxu0 0.0
  %1191 = vmatprep.subr.mxu0 0.0
  %1192 = vmatpush1.msra.mxu0 0.0
  %1193 = vmatprep.subr.mxu0 0.0
  %1194 = vmatpush1.msra.mxu0 0.0
  %1195 = vmatprep.subr.mxu0 0.0
  %1196 = vmatpush1.msra.mxu0 0.0
  %1197 = vmatprep.subr.mxu0 0.0
  %1198 = vmatpush1.msra.mxu0 0.0
  %1199 = vmatprep.subr.mxu0 0.0
  %1200 = vmatpush1.msra.mxu0 0.0
  %1201 = vmatprep.subr.mxu0 0.0
  %1202 = vmatpush1.msra.mxu0 0.0
  %1203 = vmatprep.subr.mxu0 0.0
  %1204 = vmatpush1.msra.mxu0 0.0
  %1205 = vmatprep.subr.mxu0 0.0
  %1206 = vmatpush1.msra.mxu0 0.0
  %1207 = vmatprep.subr.mxu0 0.0
  %1208 = vmatpush1.msra.mxu0 0.0
  %1209 = vmatprep.subr.mxu0 0.0
  %1210 = vmatpush1.msra.mxu0 0.0
  %1211 = vmatprep.subr.mxu0 0.0
  %1212 = vmatpush1.msra.mxu0 0.0
  %1213 = vmatprep.subr.mxu0 0.0
  %1214 = vmatpush1.msra.mxu0 0.0
  %1215 = vmatprep.subr.mxu0 0.0
  %1216 = vmatpush1.msra.mxu0 0.0
  %1217 = vmatprep.subr.mxu0 0.0
  %1218 = vmatpush1.msra.mxu0 0.0
  %1219 = vmatprep.subr.mxu0 0.0
  %1220 = vmatpush1.msra.mxu0 0.0
  %1221 = vmatprep.subr.mxu0 0.0
  %1222 = vmatpush1.msra.mxu0 0.0
  %1223 = vmatprep.subr.mxu0 0.0
  %1224 = vmatpush1.msra.mxu0 0.0
  %1225 = vmatprep.subr.mxu0 0.0
  %1226 = vmatpush1.msra.mxu0 0.0
  %1227 = vmatprep.subr.mxu0 0.0
  %1228 = vmatpush1.msra.mxu0 0.0
  %1229 = vmatprep.subr.mxu0 0.0
  %1230 = vmatpush1.msra.mxu0 0.0
  %1231 = vmatprep.subr.mxu0 0.0
  %1232 = vmatpush1.msra.mxu0 0.0
  %1233 = vmatprep.subr.mxu0 0.0
  %1234 = vmatpush1.msra.mxu0 0.0
  %1235 = vmatprep.subr.mxu0 0.0
  %1236 = vmatpush1.msra.mxu0 0.0
  %1237 = vmatprep.mubr.f32.mxu0 0.0
  %1238 = vmatmul.mubr.f32.gmra.mrb[0].mxu0 %v1171
  %v1239 = vpop.f32.mrb[0].mxu0
  %v1240 = vadd.f32 %v167, %v1239
  %v1241 = vpop.f32.mrb[0].mxu0
  %1242 = vdwg.mxu0
  %1243 = vmax.xlane.f32.xlu0 %v1240
  %v1244 = vpop.xlane.xlu0 %1243
  %v1245 = vsub.f32 %v1240, %v1244
  %v1246 = vmul.f32 %v1245, 1.442695
  %v1247 = vpow.pop %v1246
  %1248 = vadd.xlane.f32.xlu0 %v1247
  %v1249 = vpop.xlane.xlu0 %1248
  %v1250 = vlog2.pop %v1249
  %v1251 = vmul.f32 %v1250, 0.6931472
  %v1252 = vadd.f32 %v1244, %v1251
  %v1253 = vsub.f32 %v1240, %v1252
  %s1254 = scalar_lea.vmem %s7, 40
  %1255 = vst [vmem:[%s1254] sm:$0xff] %v1253
  %s1256 = scalar_lea.vmem %s1, 48
  %v1257 = vld [vmem:[%s1256] sm:$0xff]
  %1259 = vrot.lane.b32.xlu0 %v1165, 32
  %v1260 = vpop.permute.xlu0 %1259
  %v1261 = vsel %vm47, %v1260, 0
  %1263 = vmatprep.subr.mxu0 0.0
  %1264 = vmatpush1.msra.mxu0 %v30
  %1265 = vmatprep.subr.mxu0 0.0
  %1266 = vmatpush1.msra.mxu0 %v31
  %1267 = vmatprep.subr.mxu0 0.0
  %1268 = vmatpush1.msra.mxu0 %v32
  %1269 = vmatprep.subr.mxu0 0.0
  %1270 = vmatpush1.msra.mxu0 %v33
  %1271 = vmatprep.subr.mxu0 0.0
  %1272 = vmatpush1.msra.mxu0 0.0
  %1273 = vmatprep.subr.mxu0 0.0
  %1274 = vmatpush1.msra.mxu0 0.0
  %1275 = vmatprep.subr.mxu0 0.0
  %1276 = vmatpush1.msra.mxu0 0.0
  %1277 = vmatprep.subr.mxu0 0.0
  %1278 = vmatpush1.msra.mxu0 0.0
  %1279 = vmatprep.subr.mxu0 0.0
  %1280 = vmatpush1.msra.mxu0 0.0
  %1281 = vmatprep.subr.mxu0 0.0
  %1282 = vmatpush1.msra.mxu0 0.0
  %1283 = vmatprep.subr.mxu0 0.0
  %1284 = vmatpush1.msra.mxu0 0.0
  %1285 = vmatprep.subr.mxu0 0.0
  %1286 = vmatpush1.msra.mxu0 0.0
  %1287 = vmatprep.subr.mxu0 0.0
  %1288 = vmatpush1.msra.mxu0 0.0
  %1289 = vmatprep.subr.mxu0 0.0
  %1290 = vmatpush1.msra.mxu0 0.0
  %1291 = vmatprep.subr.mxu0 0.0
  %1292 = vmatpush1.msra.mxu0 0.0
  %1293 = vmatprep.subr.mxu0 0.0
  %1294 = vmatpush1.msra.mxu0 0.0
  %1295 = vmatprep.subr.mxu0 0.0
  %1296 = vmatpush1.msra.mxu0 0.0
  %1297 = vmatprep.subr.mxu0 0.0
  %1298 = vmatpush1.msra.mxu0 0.0
  %1299 = vmatprep.subr.mxu0 0.0
  %1300 = vmatpush1.msra.mxu0 0.0
  %1301 = vmatprep.subr.mxu0 0.0
  %1302 = vmatpush1.msra.mxu0 0.0
  %1303 = vmatprep.subr.mxu0 0.0
  %1304 = vmatpush1.msra.mxu0 0.0
  %1305 = vmatprep.subr.mxu0 0.0
  %1306 = vmatpush1.msra.mxu0 0.0
  %1307 = vmatprep.subr.mxu0 0.0
  %1308 = vmatpush1.msra.mxu0 0.0
  %1309 = vmatprep.subr.mxu0 0.0
  %1310 = vmatpush1.msra.mxu0 0.0
  %1311 = vmatprep.subr.mxu0 0.0
  %1312 = vmatpush1.msra.mxu0 0.0
  %1313 = vmatprep.subr.mxu0 0.0
  %1314 = vmatpush1.msra.mxu0 0.0
  %1315 = vmatprep.subr.mxu0 0.0
  %1316 = vmatpush1.msra.mxu0 0.0
  %1317 = vmatprep.subr.mxu0 0.0
  %1318 = vmatpush1.msra.mxu0 0.0
  %1319 = vmatprep.subr.mxu0 0.0
  %1320 = vmatpush1.msra.mxu0 0.0
  %1321 = vmatprep.subr.mxu0 0.0
  %1322 = vmatpush1.msra.mxu0 0.0
  %1323 = vmatprep.subr.mxu0 0.0
  %1324 = vmatpush1.msra.mxu0 0.0
  %1325 = vmatprep.subr.mxu0 0.0
  %1326 = vmatpush1.msra.mxu0 0.0
  %1327 = vmatprep.mubr.f32.mxu0 0.0
  %1328 = vmatmul.mubr.f32.gmra.mrb[0].mxu0 %v1261
  %v1329 = vpop.f32.mrb[0].mxu0
  %v1330 = vadd.f32 0.0, %v1329
  %v1331 = vpop.f32.mrb[0].mxu0
  %1332 = vdwg.mxu0
  %v1333 = vadd.f32 %v1257, %v1330
  %v1334 = vtanh.pop %v1333
  %v1335 = vxor.u32 %v1333, 2147483648
  %v1336 = vmul.f32 %v1335, 1.442695
  %v1337 = vpow.pop %v1336
  %v1338 = vadd.f32 %v1337, 1.0
  %v1339 = vrcp.pop %v1338
  %v1340 = vmul.f32 1.0, %v1339
  %v1341 = vsel %vm43, %v1334, %v1340
  %v1342 = vmul.f32 %v1341, %v1166
  %1344 = vrot.lane.b32.xlu0 %v1341, 64
  %v1345 = vpop.permute.xlu0 %1344
  %v1347 = vmul.f32 %v1341, %v1345
  %1349 = vrot.lane.b32.xlu0 %v1347, 32
  %v1350 = vpop.permute.xlu0 %1349
  %v1352 = vadd.f32 %v1342, %v1350
  %v1353 = vtanh.pop %v1352
  %1355 = vrot.lane.b32.xlu0 %v1353, 64
  %v1356 = vpop.permute.xlu0 %1355
  %v1358 = vmul.f32 %v1341, %v1356
  %vm1359 = vcmp.gt.s32.totalorder %v29, 6
  %v1360 = vsel %vm1359, 1, 0
  %1361 = vset.pattern.permute.xlu0 0
  %1362 = vperm.xlu0 %1361, %v1360
  %v1363 = vpop.permute.xlu0 %1362
  %vm1364 = vcmp.eq.s32.totalorder %v1363, 1
  %v1365 = vsel %vm1364, %v1358, %v1165
  %v1366 = vsel %vm1364, %v1352, %v1166
  %v1367 = vsel %vm1364, %v1358, 0.0
  %1369 = vrot.lane.b32.xlu0 %v1367, 32
  %v1370 = vpop.permute.xlu0 %1369
  %v1371 = vsel %vm47, %v1370, 0
  %1373 = vmatprep.subr.mxu0 0.0
  %1374 = vmatpush1.msra.mxu0 %v34
  %1375 = vmatprep.subr.mxu0 0.0
  %1376 = vmatpush1.msra.mxu0 %v35
  %1377 = vmatprep.subr.mxu0 0.0
  %1378 = vmatpush1.msra.mxu0 %v36
  %1379 = vmatprep.subr.mxu0 0.0
  %1380 = vmatpush1.msra.mxu0 %v37
  %1381 = vmatprep.subr.mxu0 0.0
  %1382 = vmatpush1.msra.mxu0 0.0
  %1383 = vmatprep.subr.mxu0 0.0
  %1384 = vmatpush1.msra.mxu0 0.0
  %1385 = vmatprep.subr.mxu0 0.0
  %1386 = vmatpush1.msra.mxu0 0.0
  %1387 = vmatprep.subr.mxu0 0.0
  %1388 = vmatpush1.msra.mxu0 0.0
  %1389 = vmatprep.subr.mxu0 0.0
  %1390 = vmatpush1.msra.mxu0 0.0
  %1391 = vmatprep.subr.mxu0 0.0
  %1392 = vmatpush1.msra.mxu0 0.0
  %1393 = vmatprep.subr.mxu0 0.0
  %1394 = vmatpush1.msra.mxu0 0.0
  %1395 = vmatprep.subr.mxu0 0.0
  %1396 = vmatpush1.msra.mxu0 0.0
  %1397 = vmatprep.subr.mxu0 0.0
  %1398 = vmatpush1.msra.mxu0 0.0
  %1399 = vmatprep.subr.mxu0 0.0
  %1400 = vmatpush1.msra.mxu0 0.0
  %1401 = vmatprep.subr.mxu0 0.0
  %1402 = vmatpush1.msra.mxu0 0.0
  %1403 = vmatprep.subr.mxu0 0.0
  %1404 = vmatpush1.msra.mxu0 0.0
  %1405 = vmatprep.subr.mxu0 0.0
  %1406 = vmatpush1.msra.mxu0 0.0
  %1407 = vmatprep.subr.mxu0 0.0
  %1408 = vmatpush1.msra.mxu0 0.0
  %1409 = vmatprep.subr.mxu0 0.0
  %1410 = vmatpush1.msra.mxu0 0.0
  %1411 = vmatprep.subr.mxu0 0.0
  %1412 = vmatpush1.msra.mxu0 0.0
  %1413 = vmatprep.subr.mxu0 0.0
  %1414 = vmatpush1.msra.mxu0 0.0
  %1415 = vmatprep.subr.mxu0 0.0
  %1416 = vmatpush1.msra.mxu0 0.0
  %1417 = vmatprep.subr.mxu0 0.0
  %1418 = vmatpush1.msra.mxu0 0.0
  %1419 = vmatprep.subr.mxu0 0.0
  %1420 = vmatpush1.msra.mxu0 0.0
  %1421 = vmatprep.subr.mxu0 0.0
  %1422 = vmatpush1.msra.mxu0 0.0
  %1423 = vmatprep.subr.mxu0 0.0
  %1424 = vmatpush1.msra.mxu0 0.0
  %1425 = vmatprep.subr.mxu0 0.0
  %1426 = vmatpush1.msra.mxu0 0.0
  %1427 = vmatprep.subr.mxu0 0.0
  %1428 = vmatpush1.msra.mxu0 0.0
  %1429 = vmatprep.subr.mxu0 0.0
  %1430 = vmatpush1.msra.mxu0 0.0
  %1431 = vmatprep.subr.mxu0 0.0
  %1432 = vmatpush1.msra.mxu0 0.0
  %1433 = vmatprep.subr.mxu0 0.0
  %1434 = vmatpush1.msra.mxu0 0.0
  %1435 = vmatprep.subr.mxu0 0.0
  %1436 = vmatpush1.msra.mxu0 0.0
  %1437 = vmatprep.mubr.f32.mxu0 0.0
  %1438 = vmatmul.mubr.f32.gmra.mrb[0].mxu0 %v1371
  %v1439 = vpop.f32.mrb[0].mxu0
  %v1440 = vadd.f32 %v167, %v1439
  %v1441 = vpop.f32.mrb[0].mxu0
  %1442 = vdwg.mxu0
  %1443 = vmax.xlane.f32.xlu0 %v1440
  %v1444 = vpop.xlane.xlu0 %1443
  %v1445 = vsub.f32 %v1440, %v1444
  %v1446 = vmul.f32 %v1445, 1.442695
  %v1447 = vpow.pop %v1446
  %1448 = vadd.xlane.f32.xlu0 %v1447
  %v1449 = vpop.xlane.xlu0 %1448
  %v1450 = vlog2.pop %v1449
  %v1451 = vmul.f32 %v1450, 0.6931472
  %v1452 = vadd.f32 %v1444, %v1451
  %v1453 = vsub.f32 %v1440, %v1452
  %s1454 = scalar_lea.vmem %s7, 48
  %1455 = vst [vmem:[%s1454] sm:$0xff] %v1453
  %s1456 = scalar_lea.vmem %s1, 56
  %v1457 = vld [vmem:[%s1456] sm:$0xff]
  %1459 = vrot.lane.b32.xlu0 %v1365, 32
  %v1460 = vpop.permute.xlu0 %1459
  %v1461 = vsel %vm47, %v1460, 0
  %1463 = vmatprep.subr.mxu0 0.0
  %1464 = vmatpush1.msra.mxu0 %v30
  %1465 = vmatprep.subr.mxu0 0.0
  %1466 = vmatpush1.msra.mxu0 %v31
  %1467 = vmatprep.subr.mxu0 0.0
  %1468 = vmatpush1.msra.mxu0 %v32
  %1469 = vmatprep.subr.mxu0 0.0
  %1470 = vmatpush1.msra.mxu0 %v33
  %1471 = vmatprep.subr.mxu0 0.0
  %1472 = vmatpush1.msra.mxu0 0.0
  %1473 = vmatprep.subr.mxu0 0.0
  %1474 = vmatpush1.msra.mxu0 0.0
  %1475 = vmatprep.subr.mxu0 0.0
  %1476 = vmatpush1.msra.mxu0 0.0
  %1477 = vmatprep.subr.mxu0 0.0
  %1478 = vmatpush1.msra.mxu0 0.0
  %1479 = vmatprep.subr.mxu0 0.0
  %1480 = vmatpush1.msra.mxu0 0.0
  %1481 = vmatprep.subr.mxu0 0.0
  %1482 = vmatpush1.msra.mxu0 0.0
  %1483 = vmatprep.subr.mxu0 0.0
  %1484 = vmatpush1.msra.mxu0 0.0
  %1485 = vmatprep.subr.mxu0 0.0
  %1486 = vmatpush1.msra.mxu0 0.0
  %1487 = vmatprep.subr.mxu0 0.0
  %1488 = vmatpush1.msra.mxu0 0.0
  %1489 = vmatprep.subr.mxu0 0.0
  %1490 = vmatpush1.msra.mxu0 0.0
  %1491 = vmatprep.subr.mxu0 0.0
  %1492 = vmatpush1.msra.mxu0 0.0
  %1493 = vmatprep.subr.mxu0 0.0
  %1494 = vmatpush1.msra.mxu0 0.0
  %1495 = vmatprep.subr.mxu0 0.0
  %1496 = vmatpush1.msra.mxu0 0.0
  %1497 = vmatprep.subr.mxu0 0.0
  %1498 = vmatpush1.msra.mxu0 0.0
  %1499 = vmatprep.subr.mxu0 0.0
  %1500 = vmatpush1.msra.mxu0 0.0
  %1501 = vmatprep.subr.mxu0 0.0
  %1502 = vmatpush1.msra.mxu0 0.0
  %1503 = vmatprep.subr.mxu0 0.0
  %1504 = vmatpush1.msra.mxu0 0.0
  %1505 = vmatprep.subr.mxu0 0.0
  %1506 = vmatpush1.msra.mxu0 0.0
  %1507 = vmatprep.subr.mxu0 0.0
  %1508 = vmatpush1.msra.mxu0 0.0
  %1509 = vmatprep.subr.mxu0 0.0
  %1510 = vmatpush1.msra.mxu0 0.0
  %1511 = vmatprep.subr.mxu0 0.0
  %1512 = vmatpush1.msra.mxu0 0.0
  %1513 = vmatprep.subr.mxu0 0.0
  %1514 = vmatpush1.msra.mxu0 0.0
  %1515 = vmatprep.subr.mxu0 0.0
  %1516 = vmatpush1.msra.mxu0 0.0
  %1517 = vmatprep.subr.mxu0 0.0
  %1518 = vmatpush1.msra.mxu0 0.0
  %1519 = vmatprep.subr.mxu0 0.0
  %1520 = vmatpush1.msra.mxu0 0.0
  %1521 = vmatprep.subr.mxu0 0.0
  %1522 = vmatpush1.msra.mxu0 0.0
  %1523 = vmatprep.subr.mxu0 0.0
  %1524 = vmatpush1.msra.mxu0 0.0
  %1525 = vmatprep.subr.mxu0 0.0
  %1526 = vmatpush1.msra.mxu0 0.0
  %1527 = vmatprep.mubr.f32.mxu0 0.0
  %1528 = vmatmul.mubr.f32.gmra.mrb[0].mxu0 %v1461
  %v1529 = vpop.f32.mrb[0].mxu0
  %v1530 = vadd.f32 0.0, %v1529
  %v1531 = vpop.f32.mrb[0].mxu0
  %1532 = vdwg.mxu0
  %v1533 = vadd.f32 %v1457, %v1530
  %v1534 = vtanh.pop %v1533
  %v1535 = vxor.u32 %v1533, 2147483648
  %v1536 = vmul.f32 %v1535, 1.442695
  %v1537 = vpow.pop %v1536
  %v1538 = vadd.f32 %v1537, 1.0
  %v1539 = vrcp.pop %v1538
  %v1540 = vmul.f32 1.0, %v1539
  %v1541 = vsel %vm43, %v1534, %v1540
  %v1542 = vmul.f32 %v1541, %v1366
  %1544 = vrot.lane.b32.xlu0 %v1541, 64
  %v1545 = vpop.permute.xlu0 %1544
  %v1547 = vmul.f32 %v1541, %v1545
  %1549 = vrot.lane.b32.xlu0 %v1547, 32
  %v1550 = vpop.permute.xlu0 %1549
  %v1552 = vadd.f32 %v1542, %v1550
  %v1553 = vtanh.pop %v1552
  %1555 = vrot.lane.b32.xlu0 %v1553, 64
  %v1556 = vpop.permute.xlu0 %1555
  %v1558 = vmul.f32 %v1541, %v1556
  %vm1559 = vcmp.gt.s32.totalorder %v29, 7
  %v1560 = vsel %vm1559, 1, 0
  %1561 = vset.pattern.permute.xlu0 0
  %1562 = vperm.xlu0 %1561, %v1560
  %v1563 = vpop.permute.xlu0 %1562
  %vm1564 = vcmp.eq.s32.totalorder %v1563, 1
  %v1565 = vsel %vm1564, %v1558, %v1365
  %v1566 = vsel %vm1564, %v1552, %v1366
  %v1567 = vsel %vm1564, %v1558, 0.0
  %1569 = vrot.lane.b32.xlu0 %v1567, 32
  %v1570 = vpop.permute.xlu0 %1569
  %v1571 = vsel %vm47, %v1570, 0
  %1573 = vmatprep.subr.mxu0 0.0
  %1574 = vmatpush1.msra.mxu0 %v34
  %1575 = vmatprep.subr.mxu0 0.0
  %1576 = vmatpush1.msra.mxu0 %v35
  %1577 = vmatprep.subr.mxu0 0.0
  %1578 = vmatpush1.msra.mxu0 %v36
  %1579 = vmatprep.subr.mxu0 0.0
  %1580 = vmatpush1.msra.mxu0 %v37
  %1581 = vmatprep.subr.mxu0 0.0
  %1582 = vmatpush1.msra.mxu0 0.0
  %1583 = vmatprep.subr.mxu0 0.0
  %1584 = vmatpush1.msra.mxu0 0.0
  %1585 = vmatprep.subr.mxu0 0.0
  %1586 = vmatpush1.msra.mxu0 0.0
  %1587 = vmatprep.subr.mxu0 0.0
  %1588 = vmatpush1.msra.mxu0 0.0
  %1589 = vmatprep.subr.mxu0 0.0
  %1590 = vmatpush1.msra.mxu0 0.0
  %1591 = vmatprep.subr.mxu0 0.0
  %1592 = vmatpush1.msra.mxu0 0.0
  %1593 = vmatprep.subr.mxu0 0.0
  %1594 = vmatpush1.msra.mxu0 0.0
  %1595 = vmatprep.subr.mxu0 0.0
  %1596 = vmatpush1.msra.mxu0 0.0
  %1597 = vmatprep.subr.mxu0 0.0
  %1598 = vmatpush1.msra.mxu0 0.0
  %1599 = vmatprep.subr.mxu0 0.0
  %1600 = vmatpush1.msra.mxu0 0.0
  %1601 = vmatprep.subr.mxu0 0.0
  %1602 = vmatpush1.msra.mxu0 0.0
  %1603 = vmatprep.subr.mxu0 0.0
  %1604 = vmatpush1.msra.mxu0 0.0
  %1605 = vmatprep.subr.mxu0 0.0
  %1606 = vmatpush1.msra.mxu0 0.0
  %1607 = vmatprep.subr.mxu0 0.0
  %1608 = vmatpush1.msra.mxu0 0.0
  %1609 = vmatprep.subr.mxu0 0.0
  %1610 = vmatpush1.msra.mxu0 0.0
  %1611 = vmatprep.subr.mxu0 0.0
  %1612 = vmatpush1.msra.mxu0 0.0
  %1613 = vmatprep.subr.mxu0 0.0
  %1614 = vmatpush1.msra.mxu0 0.0
  %1615 = vmatprep.subr.mxu0 0.0
  %1616 = vmatpush1.msra.mxu0 0.0
  %1617 = vmatprep.subr.mxu0 0.0
  %1618 = vmatpush1.msra.mxu0 0.0
  %1619 = vmatprep.subr.mxu0 0.0
  %1620 = vmatpush1.msra.mxu0 0.0
  %1621 = vmatprep.subr.mxu0 0.0
  %1622 = vmatpush1.msra.mxu0 0.0
  %1623 = vmatprep.subr.mxu0 0.0
  %1624 = vmatpush1.msra.mxu0 0.0
  %1625 = vmatprep.subr.mxu0 0.0
  %1626 = vmatpush1.msra.mxu0 0.0
  %1627 = vmatprep.subr.mxu0 0.0
  %1628 = vmatpush1.msra.mxu0 0.0
  %1629 = vmatprep.subr.mxu0 0.0
  %1630 = vmatpush1.msra.mxu0 0.0
  %1631 = vmatprep.subr.mxu0 0.0
  %1632 = vmatpush1.msra.mxu0 0.0
  %1633 = vmatprep.subr.mxu0 0.0
  %1634 = vmatpush1.msra.mxu0 0.0
  %1635 = vmatprep.subr.mxu0 0.0
  %1636 = vmatpush1.msra.mxu0 0.0
  %1637 = vmatprep.mubr.f32.mxu0 0.0
  %1638 = vmatmul.mubr.f32.gmra.mrb[0].mxu0 %v1571
  %v1639 = vpop.f32.mrb[0].mxu0
  %v1640 = vadd.f32 %v167, %v1639
  %v1641 = vpop.f32.mrb[0].mxu0
  %1642 = vdwg.mxu0
  %1643 = vmax.xlane.f32.xlu0 %v1640
  %v1644 = vpop.xlane.xlu0 %1643
  %v1645 = vsub.f32 %v1640, %v1644
  %v1646 = vmul.f32 %v1645, 1.442695
  %v1647 = vpow.pop %v1646
  %1648 = vadd.xlane.f32.xlu0 %v1647
  %v1649 = vpop.xlane.xlu0 %1648
  %v1650 = vlog2.pop %v1649
  %v1651 = vmul.f32 %v1650, 0.6931472
  %v1652 = vadd.f32 %v1644, %v1651
  %v1653 = vsub.f32 %v1640, %v1652
  %s1654 = scalar_lea.vmem %s7, 56
  %1655 = vst [vmem:[%s1654] sm:$0xff] %v1653
  %1657 = vrot.lane.b32.xlu0 %v1565, 32
  %v1658 = vpop.permute.xlu0 %1657
  %1660 = vst.msk [vmem:[%s8] sm:$0xff] %vm47, %v1658
  %1662 = vrot.lane.b32.xlu0 %v1566, 96
  %v1663 = vpop.permute.xlu0 %1662
  %1665 = vst.msk [vmem:[%s9] sm:$0xff] %vm47, %v1663
  // Predicated region
  $region30: #{decoder_lstm_forward.1} parent=0 // pred_check
    _
  $region31: #{decoder_lstm_forward.1} parent=0 // pred_check_branch
    %1667 = sbr.rel (0) target = $region33
  $region32: #{decoder_lstm_forward.1} parent=0 // pred_region
    _
  $region33: #{decoder_lstm_forward.1} parent=0 // pred_fallthru
    _
  // Predicated region
  $region34: #{decoder_lstm_forward.1} parent=0 // pred_check
    _
  $region35: #{decoder_lstm_forward.1} parent=0 // pred_check_branch
    %1669 = sbr.rel (0) target = $region37
  $region36: #{decoder_lstm_forward.1} parent=0 // pred_region
    _
  $region37: #{decoder_lstm_forward.1} parent=0 // pred_fallthru
    _
  // Predicated region
  $region38: #{decoder_lstm_forward.1} parent=0 // pred_check
    _
  $region39: #{decoder_lstm_forward.1} parent=0 // pred_check_branch
    %1671 = sbr.rel (0) target = $region41
  $region40: #{decoder_lstm_forward.1} parent=0 // pred_region
    _
  $region41: #{decoder_lstm_forward.1} parent=0 // pred_fallthru
    _
  // Predicated region
  $region42: #{decoder_lstm_forward.1} parent=0 // pred_check
    _
  $region43: #{decoder_lstm_forward.1} parent=0 // pred_check_branch
    %1673 = sbr.rel (0) target = $region45
  $region44: #{decoder_lstm_forward.1} parent=0 // pred_region
    _
  $region45: #{decoder_lstm_forward.1} parent=0 // pred_fallthru
    _
  // Predicated region
  $region46: #{decoder_lstm_forward.1} parent=0 // pred_check
    _
  $region47: #{decoder_lstm_forward.1} parent=0 // pred_check_branch
    %1675 = sbr.rel (0) target = $region49
  $region48: #{decoder_lstm_forward.1} parent=0 // pred_region
    _
  $region49: #{decoder_lstm_forward.1} parent=0 // pred_fallthru
    _
  // Predicated region
  $region50: #{decoder_lstm_forward.1} parent=0 // pred_check
    _
  $region51: #{decoder_lstm_forward.1} parent=0 // pred_check_branch
    %1677 = sbr.rel (0) target = $region53
  $region52: #{decoder_lstm_forward.1} parent=0 // pred_region
    _
  $region53: #{decoder_lstm_forward.1} parent=0 // pred_fallthru
    _

</llo_original>
